<compile_context>
chip_gen: v7x
topology: tpu7x:2x2x1
jax: 0.10.0
libtpu: 0.0.40
codegen_flags: <defaults>
</compile_context>

<pallas_src>
import numpy as np
import jax
import jax.numpy as jnp
from jax.experimental import pallas as pl
from jax.experimental.pallas import tpu as pltpu

HIGH = jax.lax.Precision.HIGHEST


def build_layout(cfg):
    """Static row/column offsets for the packed weight/bias slabs."""
    D, H, V = cfg["embed_dim"], cfg["hidden"], cfg["vocab"]
    S = cfg["seq_len"]
    L = cfg["max_token_length"] + 2
    F = sum(nf for _, nf in cfg["filters"])
    n_hw, n_lstm = cfg["n_highway"], cfg["n_lstm"]
    Kmax = max(w for w, _ in cfg["filters"]) * D

    conv_rows, off = [], 0
    for (w, _) in cfg["filters"]:
        t_w = L - w + 1
        conv_rows.append((off, t_w))
        off += t_w * S
    slab_rows = off

    w_off = {}
    w_off["conv"] = 0
    w_off["hw"] = Kmax
    w_off["wih0"] = w_off["hw"] + n_hw * F
    w_off["whh0"] = w_off["wih0"] + F
    w_off["wfused"] = w_off["whh0"] + H
    w_off["wout"] = w_off["wfused"] + max(n_lstm - 1, 0) * 2 * H
    w_rows = -(-(w_off["wout"] + H) // 8) * 8
    wcols = -(-max(F, 2 * F, 4 * H, V) // 128) * 128

    b_off = {"conv": 0, "hw": 1, "lstm": 1 + n_hw, "out": 1 + n_hw + n_lstm}
    b_rows = 1 + n_hw + n_lstm + 1
    return dict(Kmax=Kmax, conv_rows=conv_rows, slab_rows=slab_rows,
                w_off=w_off, w_rows=w_rows, wcols=wcols,
                b_off=b_off, b_rows=b_rows)


def make_kernel(cfg, layout):
    filters = cfg["filters"]
    n_highway, n_lstm = cfg["n_highway"], cfg["n_lstm"]
    S, H = cfg["seq_len"], cfg["hidden"]
    F = sum(nf for _, nf in filters)
    Kmax = layout["Kmax"]
    r, b = layout["w_off"], layout["b_off"]
    conv_rows = layout["conv_rows"]
    WCOLS = layout["wcols"]

    def kernel(slab_ref, w_ref, b_ref, out_ref):
        # --- Fused char-CNN: one MXU matmul over all filter widths ---
        conv_w = w_ref[r["conv"]:r["conv"] + Kmax, :]                 # (Kmax, WCOLS)
        res = jnp.dot(slab_ref[...], conv_w,
                      preferred_element_type=jnp.float32)             # (rows, WCOLS)
        feats, col = [], 0
        for (w, nf), (row_off, t_w) in zip(filters, conv_rows):
            blk = res[row_off:row_off + t_w * S, :].reshape(t_w, S, WCOLS)
            feats.append(jnp.max(blk, axis=0)[:, col:col + nf])       # (S, nf)
            col += nf
        bc = b_ref[b["conv"]:b["conv"] + 1, :F]
        x = jnp.tanh(jnp.concatenate(feats, axis=1) + bc)             # (S, F)

        # --- Highway: fused [transform | highway] matmul per layer ---
        z = x
        for l in range(n_highway):
            hw_w = w_ref[r["hw"] + l * F: r["hw"] + (l + 1) * F, :]   # (F, WCOLS)
            hw_b = b_ref[b["hw"] + l: b["hw"] + l + 1, :]             # (1, WCOLS)
            gates = (jnp.dot(z, hw_w, preferred_element_type=jnp.float32)
                     + hw_b)
            t_gate = jax.nn.sigmoid(gates[:, :F])
            h_act = jnp.maximum(gates[:, F:2 * F], 0.0)
            z = t_gate * h_act + (1.0 - t_gate) * z                   # (S, F)

        # --- Stacked LSTM, batch=1, zero init state, gate order [i,f,o,g]. ---
        # Layer 0: hoisted input projection (bias folded in).
        wih0 = w_ref[r["wih0"]:r["wih0"] + F, :4 * H]
        whh0 = w_ref[r["whh0"]:r["whh0"] + H, :4 * H]
        b0 = b_ref[b["lstm"]:b["lstm"] + 1, :4 * H]
        xg0 = jnp.dot(z, wih0, preferred_element_type=jnp.float32) + b0   # (S, 4H)
        # Layers >= 1: fused [Wih; Whh] weights for a single per-step matmul.
        wf = [w_ref[r["wfused"] + (l - 1) * 2 * H: r["wfused"] + l * 2 * H, :4 * H]
              for l in range(1, n_lstm)]
        bl = [b_ref[b["lstm"] + l: b["lstm"] + l + 1, :4 * H]
              for l in range(1, n_lstm)]

        h = [jnp.zeros((1, H), jnp.float32) for _ in range(n_lstm)]
        c = [jnp.zeros((1, H), jnp.float32) for _ in range(n_lstm)]
        # Wavefront: iteration k runs layer l's step (k - l); all layers read
        # only hidden states from iteration k-1 -> independent within the
        # iteration, so their dependent matmul/EUP chains overlap.
        for k in range(S + n_lstm - 1):
            h_prev = list(h)
            for l in range(n_lstm):
                t = k - l
                if t < 0 or t >= S:
                    continue
                if l == 0:
                    gates = xg0[t:t + 1, :] + jnp.dot(
                        h_prev[0], whh0, preferred_element_type=jnp.float32)
                else:
                    inp = jnp.concatenate([h_prev[l - 1], h_prev[l]], axis=1)
                    gates = jnp.dot(inp, wf[l - 1],
                                    preferred_element_type=jnp.float32) + bl[l - 1]
                sg = jax.nn.sigmoid(gates)        # full (1, 4H) vreg, one EUP push
                tg = jnp.tanh(gates)              # full (1, 4H) vreg, one EUP push
                c[l] = sg[:, H:2 * H] * c[l] + sg[:, :H] * tg[:, 3 * H:]
                h[l] = sg[:, 2 * H:3 * H] * jnp.tanh(c[l])

        # TODO(synk): LSTM inter-layer dropout / prediction_layer_dropout are
        # identity at inference; no RNG applied here.
        wout = w_ref[r["wout"]:r["wout"] + H, :]
        bout = b_ref[b["out"]:b["out"] + 1, :]
        out_ref[...] = (jnp.dot(h[n_lstm - 1], wout,
                                preferred_element_type=jnp.float32) + bout)

    return kernel


def pack_inputs(emb, params, cfg, layout):
    """Wrapper-side layout plumbing: fused im2col slab + packed weight/bias slabs."""
    S, L, D = emb.shape
    H, V = cfg["hidden"], cfg["vocab"]
    F = sum(nf for _, nf in cfg["filters"])
    Kmax, WCOLS = layout["Kmax"], layout["wcols"]
    r, bo = layout["w_off"], layout["b_off"]

    # conv: time-major im2col slab per width, K zero-padded to Kmax, row-stacked
    slabs = []
    for (w, nf) in cfg["filters"]:
        t_w = L - w + 1
        s = jnp.stack([emb[:, t:t + w, :].reshape(S, w * D) for t in range(t_w)],
                      axis=0).reshape(t_w * S, w * D)
        slabs.append(jnp.pad(s, ((0, 0), (0, Kmax - w * D))))
    slab = jnp.concatenate(slabs, axis=0).astype(jnp.float32)      # (rows, Kmax)

    # single lane-dense weight slab
    Wslab = jnp.zeros((layout["w_rows"], WCOLS), jnp.float32)
    col = 0
    for (w, nf), (Wc, _) in zip(cfg["filters"], params["conv"]):
        Wslab = Wslab.at[0:w * D, col:col + nf].set(Wc.reshape(w * D, nf))
        col += nf
    for l, (hw_w, hw_b, tw_w, tw_b) in enumerate(params["highway"]):
        Wslab = Wslab.at[r["hw"] + l * F: r["hw"] + (l + 1) * F, 0:2 * F].set(
            jnp.concatenate([tw_w, hw_w], axis=1))

    def reorder(m):      # PyTorch gate order (i,f,g,o) -> kernel order (i,f,o,g)
        return jnp.concatenate([m[:, :2 * H], m[:, 3 * H:], m[:, 2 * H:3 * H]], axis=1)

    Wih0, Whh0, _ = params["lstm"][0]
    Wslab = Wslab.at[r["wih0"]:r["wih0"] + F, 0:4 * H].set(reorder(Wih0))
    Wslab = Wslab.at[r["whh0"]:r["whh0"] + H, 0:4 * H].set(reorder(Whh0))
    for l in range(1, cfg["n_lstm"]):
        Wih, Whh, _ = params["lstm"][l]
        wfused = jnp.concatenate([reorder(Wih), reorder(Whh)], axis=0)   # (2H, 4H)
        Wslab = Wslab.at[r["wfused"] + (l - 1) * 2 * H: r["wfused"] + l * 2 * H,
                         0:4 * H].set(wfused)
    Wslab = Wslab.at[r["wout"]:r["wout"] + H, 0:V].set(params["wout"])

    # single bias slab
    Bslab = jnp.zeros((layout["b_rows"], WCOLS), jnp.float32)
    bc = jnp.concatenate([bconv for (_, bconv) in params["conv"]], axis=1)
    Bslab = Bslab.at[bo["conv"]:bo["conv"] + 1, 0:F].set(bc)
    for l, (hw_w, hw_b, tw_w, tw_b) in enumerate(params["highway"]):
        Bslab = Bslab.at[bo["hw"] + l, 0:2 * F].set(
            jnp.concatenate([tw_b, hw_b], axis=1)[0])
    for l, (_, _, bg) in enumerate(params["lstm"]):
        Bslab = Bslab.at[bo["lstm"] + l, 0:4 * H].set(reorder(bg)[0])
    Bslab = Bslab.at[bo["out"], 0:V].set(params["bout"][0])

    return [slab, Wslab, Bslab]


def forward_pallas(emb, params, cfg):
    V = cfg["vocab"]
    layout = build_layout(cfg)
    inputs = pack_inputs(emb, params, cfg, layout)
    kernel = make_kernel(cfg, layout)
    out = pl.pallas_call(
        kernel,
        out_shape=jax.ShapeDtypeStruct((1, layout["wcols"]), jnp.float32),
        in_specs=[pl.BlockSpec(memory_space=pltpu.MemorySpace.VMEM)] * len(inputs),
        out_specs=pl.BlockSpec(memory_space=pltpu.MemorySpace.VMEM),
    )(*inputs)
    return out[:, :V]


def forward_ref(emb, params, cfg):
    """Pure-JAX reference with the original PyTorch math/ordering."""
    S, L, D = emb.shape
    H = cfg["hidden"]
    feats = []
    for (w, nf), (Wc, bc) in zip(cfg["filters"], params["conv"]):
        cols = []
        for t in range(L - w + 1):
            acc = jnp.zeros((S, nf), jnp.float32)
            for i in range(w):
                acc = acc + jnp.dot(emb[:, t + i, :], Wc[i], precision=HIGH)
            cols.append(jnp.tanh(acc + bc))
        feats.append(jnp.max(jnp.stack(cols, 0), axis=0))
    z = jnp.concatenate(feats, axis=1)
    for hw_w, hw_b, tw_w, tw_b in params["highway"]:
        t_gate = jax.nn.sigmoid(jnp.dot(z, tw_w, precision=HIGH) + tw_b)
        h_act = jnp.maximum(jnp.dot(z, hw_w, precision=HIGH) + hw_b, 0.0)
        z = t_gate * h_act + (1.0 - t_gate) * z
    layer_in = z
    for (Wih, Whh, bg) in params["lstm"]:
        h = jnp.zeros((1, H), jnp.float32)
        c = jnp.zeros((1, H), jnp.float32)
        outs = []
        for t in range(S):
            gates = (jnp.dot(layer_in[t:t + 1], Wih, precision=HIGH)
                     + jnp.dot(h, Whh, precision=HIGH) + bg)
            i_g = jax.nn.sigmoid(gates[:, :H])
            f_g = jax.nn.sigmoid(gates[:, H:2 * H])
            g_g = jnp.tanh(gates[:, 2 * H:3 * H])
            o_g = jax.nn.sigmoid(gates[:, 3 * H:])
            c = f_g * c + i_g * g_g
            h = o_g * jnp.tanh(c)
            outs.append(h)
        layer_in = jnp.concatenate(outs, 0)
    return jnp.dot(layer_in[S - 1:S], params["wout"], precision=HIGH) + params["bout"]


def init_params(key, cfg):
    D, H, V = cfg["embed_dim"], cfg["hidden"], cfg["vocab"]
    F_total = sum(nf for _, nf in cfg["filters"])
    k = iter(jax.random.split(key, 64))
    params = {}
    params["emb_table"] = 0.1 * jax.random.normal(
        next(k), (cfg["num_chars"] + 2, D), jnp.float32)
    params["conv"] = []
    for (w, nf) in cfg["filters"]:
        Wc = 0.2 * jax.random.normal(next(k), (w, D, nf), jnp.float32)
        bc = 0.1 * jax.random.normal(next(k), (1, nf), jnp.float32)
        params["conv"].append((Wc, bc))
    params["highway"] = []
    for _ in range(cfg["n_highway"]):
        hw_w = 0.2 * jax.random.normal(next(k), (F_total, F_total), jnp.float32)
        hw_b = 0.1 * jax.random.normal(next(k), (1, F_total), jnp.float32)
        tw_w = 0.2 * jax.random.normal(next(k), (F_total, F_total), jnp.float32)
        tw_b = 0.1 * jax.random.normal(next(k), (1, F_total), jnp.float32)
        params["highway"].append((hw_w, hw_b, tw_w, tw_b))
    params["lstm"] = []
    in_size = F_total
    for _ in range(cfg["n_lstm"]):
        Wih = 0.2 * jax.random.normal(next(k), (in_size, 4 * H), jnp.float32)
        Whh = 0.2 * jax.random.normal(next(k), (H, 4 * H), jnp.float32)
        bg = 0.1 * jax.random.normal(next(k), (1, 4 * H), jnp.float32)
        params["lstm"].append((Wih, Whh, bg))
        in_size = H
    params["wout"] = 0.2 * jax.random.normal(next(k), (H, V), jnp.float32)
    params["bout"] = 0.1 * jax.random.normal(next(k), (1, V), jnp.float32)
    return params


def build_char_embeddings(key, params, cfg):
    """Glue reproducing CharEmbeddings: [start] + chars + [end], zero-padded to L."""
    S = cfg["seq_len"]
    L = cfg["max_token_length"] + 2
    num_chars = cfg["num_chars"]
    start_idx, end_idx = num_chars, num_chars + 1
    k1, k2 = jax.random.split(key)
    lengths = np.asarray(jax.random.randint(k1, (S,), 1, cfg["max_token_length"] + 1))
    chars = np.asarray(
        jax.random.randint(k2, (S, cfg["max_token_length"]), 0, num_chars))
    idx = np.zeros((S, L), dtype=np.int32)
    mask = np.zeros((S, L), dtype=np.float32)
    for s in range(S):
        n = int(lengths[s])
        idx[s, 0] = start_idx
        idx[s, 1:1 + n] = chars[s, :n]
        idx[s, 1 + n] = end_idx
        mask[s, :n + 2] = 1.0
    emb = params["emb_table"][jnp.asarray(idx)] * jnp.asarray(mask)[:, :, None]
    return emb.astype(jnp.float32)


if __name__ == "__main__":
    cfg = dict(
        max_token_length=6,          # L = 8 rows per token (with start/end markers)
        embed_dim=16,                # char embedding dim D
        num_chars=20,                # embedding table has num_chars + 2 rows
        filters=[(2, 8), (3, 16), (4, 8)],   # (width, num_filters) -> total_filters=32
        seq_len=8,                   # tokens per sequence (PyTorch "batch_size")
        n_highway=2,
        n_lstm=2,
        hidden=32,                   # rnn_hidden_units
        vocab=64,                    # vocab_size
    )
    key = jax.random.PRNGKey(0)
    pkey, dkey = jax.random.split(key)
    params = init_params(pkey, cfg)
    emb = build_char_embeddings(dkey, params, cfg)   # (S, L, D) = (8, 8, 16)

    out = forward_pallas(emb, params, cfg)
    out = jax.block_until_ready(out)

    ref = forward_ref(emb, params, cfg)
    np.testing.assert_allclose(np.asarray(out), np.asarray(ref), rtol=1e-4, atol=1e-4)
    assert out.shape == (1, cfg["vocab"])
    print("KERNEL_OK")
</pallas_src>

<mosaic_0001>
module attributes {stable_mosaic.version = 11 : i64} {
  func.func @kernel(%arg0: memref<144x64xf32, #tpu.memory_space<vmem>>, %arg1: memref<288x128xf32, #tpu.memory_space<vmem>>, %arg2: memref<6x128xf32, #tpu.memory_space<vmem>>, %arg3: memref<1x128xf32, #tpu.memory_space<vmem>>) attributes {dimension_semantics = [], scalar_prefetch = 0 : i64, scratch_operands = 0 : i64, tpu.core_type = #tpu.core_type<tc>} {
    %c0 = arith.constant 0 : index
    %c0_0 = arith.constant 0 : index
    %0 = vector.load %arg1[%c0, %c0_0] : memref<288x128xf32, #tpu.memory_space<vmem>>, vector<64x128xf32>
    %c0_1 = arith.constant 0 : index
    %c0_2 = arith.constant 0 : index
    %1 = vector.load %arg0[%c0_1, %c0_2] : memref<144x64xf32, #tpu.memory_space<vmem>>, vector<144x64xf32>
    %cst = arith.constant dense<0.000000e+00> : vector<144x128xf32>
    %2 = tpu.matmul %1, %0, %cst {dimension_numbers = #tpu.dot_dimension_numbers<[1], [0], [0], [1], [0, 0, 1, 1], [], []>} : vector<144x64xf32>, vector<64x128xf32>, vector<144x128xf32> -> vector<144x128xf32>
    %3 = vector.extract_strided_slice %2 {offsets = [0, 0], sizes = [56, 128], strides = [1, 1]} : vector<144x128xf32> to vector<56x128xf32>
    %4 = vector.shape_cast %3 : vector<56x128xf32> to vector<7x8x128xf32>
    %cst_3 = arith.constant dense<0xFF800000> : vector<8x128xf32>
    %5 = vector.multi_reduction <maximumf>, %4, %cst_3 [0] : vector<7x8x128xf32> to vector<8x128xf32>
    %6 = vector.extract_strided_slice %5 {offsets = [0, 0], sizes = [8, 8], strides = [1, 1]} : vector<8x128xf32> to vector<8x8xf32>
    %7 = vector.extract_strided_slice %2 {offsets = [56, 0], sizes = [48, 128], strides = [1, 1]} : vector<144x128xf32> to vector<48x128xf32>
    %8 = vector.shape_cast %7 : vector<48x128xf32> to vector<6x8x128xf32>
    %cst_4 = arith.constant dense<0xFF800000> : vector<8x128xf32>
    %9 = vector.multi_reduction <maximumf>, %8, %cst_4 [0] : vector<6x8x128xf32> to vector<8x128xf32>
    %10 = vector.extract_strided_slice %9 {offsets = [0, 8], sizes = [8, 16], strides = [1, 1]} : vector<8x128xf32> to vector<8x16xf32>
    %11 = vector.extract_strided_slice %2 {offsets = [104, 0], sizes = [40, 128], strides = [1, 1]} : vector<144x128xf32> to vector<40x128xf32>
    %12 = vector.shape_cast %11 : vector<40x128xf32> to vector<5x8x128xf32>
    %cst_5 = arith.constant dense<0xFF800000> : vector<8x128xf32>
    %13 = vector.multi_reduction <maximumf>, %12, %cst_5 [0] : vector<5x8x128xf32> to vector<8x128xf32>
    %14 = vector.extract_strided_slice %13 {offsets = [0, 24], sizes = [8, 8], strides = [1, 1]} : vector<8x128xf32> to vector<8x8xf32>
    %c0_6 = arith.constant 0 : index
    %c0_7 = arith.constant 0 : index
    %15 = vector.load %arg2[%c0_6, %c0_7] : memref<6x128xf32, #tpu.memory_space<vmem>>, vector<1x32xf32>
    %16 = tpu.concatenate %6, %10, %14 in 1 : vector<8x8xf32>, vector<8x16xf32>, vector<8x8xf32> -> vector<8x32xf32>
    %17 = vector.broadcast %15 : vector<1x32xf32> to vector<8x32xf32>
    %18 = arith.addf %16, %17 : vector<8x32xf32>
    %19 = math.tanh %18 : vector<8x32xf32>
    %c64 = arith.constant 64 : index
    %c0_8 = arith.constant 0 : index
    %20 = vector.load %arg1[%c64, %c0_8] : memref<288x128xf32, #tpu.memory_space<vmem>>, vector<32x128xf32>
    %c1 = arith.constant 1 : index
    %c0_9 = arith.constant 0 : index
    %21 = vector.load %arg2[%c1, %c0_9] : memref<6x128xf32, #tpu.memory_space<vmem>>, vector<1x128xf32>
    %cst_10 = arith.constant dense<0.000000e+00> : vector<8x128xf32>
    %22 = tpu.matmul %19, %20, %cst_10 {dimension_numbers = #tpu.dot_dimension_numbers<[1], [0], [0], [1], [0, 0, 1, 1], [], []>} : vector<8x32xf32>, vector<32x128xf32>, vector<8x128xf32> -> vector<8x128xf32>
    %23 = vector.broadcast %21 : vector<1x128xf32> to vector<8x128xf32>
    %24 = arith.addf %22, %23 : vector<8x128xf32>
    %25 = vector.extract_strided_slice %24 {offsets = [0, 0], sizes = [8, 32], strides = [1, 1]} : vector<8x128xf32> to vector<8x32xf32>
    %26 = arith.negf %25 : vector<8x32xf32>
    %27 = math.exp %26 : vector<8x32xf32>
    %cst_11 = arith.constant 1.000000e+00 : f32
    %28 = vector.broadcast %cst_11 : f32 to vector<8x32xf32>
    %29 = arith.addf %28, %27 : vector<8x32xf32>
    %30 = arith.divf %28, %29 : vector<8x32xf32>
    %31 = vector.extract_strided_slice %24 {offsets = [0, 32], sizes = [8, 32], strides = [1, 1]} : vector<8x128xf32> to vector<8x32xf32>
    %cst_12 = arith.constant 0.000000e+00 : f32
    %32 = vector.broadcast %cst_12 : f32 to vector<8x32xf32>
    %33 = arith.maximumf %31, %32 : vector<8x32xf32>
    %34 = arith.mulf %30, %33 : vector<8x32xf32>
    %cst_13 = arith.constant 1.000000e+00 : f32
    %35 = vector.broadcast %cst_13 : f32 to vector<8x32xf32>
    %36 = arith.subf %35, %30 : vector<8x32xf32>
    %37 = arith.mulf %36, %19 : vector<8x32xf32>
    %38 = arith.addf %34, %37 : vector<8x32xf32>
    %c96 = arith.constant 96 : index
    %c0_14 = arith.constant 0 : index
    %39 = vector.load %arg1[%c96, %c0_14] : memref<288x128xf32, #tpu.memory_space<vmem>>, vector<32x128xf32>
    %c2 = arith.constant 2 : index
    %c0_15 = arith.constant 0 : index
    %40 = vector.load %arg2[%c2, %c0_15] : memref<6x128xf32, #tpu.memory_space<vmem>>, vector<1x128xf32>
    %cst_16 = arith.constant dense<0.000000e+00> : vector<8x128xf32>
    %41 = tpu.matmul %38, %39, %cst_16 {dimension_numbers = #tpu.dot_dimension_numbers<[1], [0], [0], [1], [0, 0, 1, 1], [], []>} : vector<8x32xf32>, vector<32x128xf32>, vector<8x128xf32> -> vector<8x128xf32>
    %42 = vector.broadcast %40 : vector<1x128xf32> to vector<8x128xf32>
    %43 = arith.addf %41, %42 : vector<8x128xf32>
    %44 = vector.extract_strided_slice %43 {offsets = [0, 0], sizes = [8, 32], strides = [1, 1]} : vector<8x128xf32> to vector<8x32xf32>
    %45 = arith.negf %44 : vector<8x32xf32>
    %46 = math.exp %45 : vector<8x32xf32>
    %cst_17 = arith.constant 1.000000e+00 : f32
    %47 = vector.broadcast %cst_17 : f32 to vector<8x32xf32>
    %48 = arith.addf %47, %46 : vector<8x32xf32>
    %49 = arith.divf %47, %48 : vector<8x32xf32>
    %50 = vector.extract_strided_slice %43 {offsets = [0, 32], sizes = [8, 32], strides = [1, 1]} : vector<8x128xf32> to vector<8x32xf32>
    %cst_18 = arith.constant 0.000000e+00 : f32
    %51 = vector.broadcast %cst_18 : f32 to vector<8x32xf32>
    %52 = arith.maximumf %50, %51 : vector<8x32xf32>
    %53 = arith.mulf %49, %52 : vector<8x32xf32>
    %cst_19 = arith.constant 1.000000e+00 : f32
    %54 = vector.broadcast %cst_19 : f32 to vector<8x32xf32>
    %55 = arith.subf %54, %49 : vector<8x32xf32>
    %56 = arith.mulf %55, %38 : vector<8x32xf32>
    %57 = arith.addf %53, %56 : vector<8x32xf32>
    %c128 = arith.constant 128 : index
    %c0_20 = arith.constant 0 : index
    %58 = vector.load %arg1[%c128, %c0_20] : memref<288x128xf32, #tpu.memory_space<vmem>>, vector<32x128xf32>
    %c160 = arith.constant 160 : index
    %c0_21 = arith.constant 0 : index
    %59 = vector.load %arg1[%c160, %c0_21] : memref<288x128xf32, #tpu.memory_space<vmem>>, vector<32x128xf32>
    %c3 = arith.constant 3 : index
    %c0_22 = arith.constant 0 : index
    %60 = vector.load %arg2[%c3, %c0_22] : memref<6x128xf32, #tpu.memory_space<vmem>>, vector<1x128xf32>
    %cst_23 = arith.constant dense<0.000000e+00> : vector<8x128xf32>
    %61 = tpu.matmul %57, %58, %cst_23 {dimension_numbers = #tpu.dot_dimension_numbers<[1], [0], [0], [1], [0, 0, 1, 1], [], []>} : vector<8x32xf32>, vector<32x128xf32>, vector<8x128xf32> -> vector<8x128xf32>
    %62 = vector.broadcast %60 : vector<1x128xf32> to vector<8x128xf32>
    %63 = arith.addf %61, %62 : vector<8x128xf32>
    %c192 = arith.constant 192 : index
    %c0_24 = arith.constant 0 : index
    %64 = vector.load %arg1[%c192, %c0_24] : memref<288x128xf32, #tpu.memory_space<vmem>>, vector<64x128xf32>
    %c4 = arith.constant 4 : index
    %c0_25 = arith.constant 0 : index
    %65 = vector.load %arg2[%c4, %c0_25] : memref<6x128xf32, #tpu.memory_space<vmem>>, vector<1x128xf32>
    %cst_26 = arith.constant 0.000000e+00 : f32
    %66 = vector.broadcast %cst_26 : f32 to vector<1x32xf32>
    %cst_27 = arith.constant 0.000000e+00 : f32
    %67 = vector.broadcast %cst_27 : f32 to vector<1x32xf32>
    %cst_28 = arith.constant 0.000000e+00 : f32
    %68 = vector.broadcast %cst_28 : f32 to vector<1x32xf32>
    %cst_29 = arith.constant 0.000000e+00 : f32
    %69 = vector.broadcast %cst_29 : f32 to vector<1x32xf32>
    %70 = vector.extract_strided_slice %63 {offsets = [0, 0], sizes = [1, 128], strides = [1, 1]} : vector<8x128xf32> to vector<1x128xf32>
    %cst_30 = arith.constant dense<0.000000e+00> : vector<1x128xf32>
    %71 = tpu.matmul %66, %59, %cst_30 {dimension_numbers = #tpu.dot_dimension_numbers<[1], [0], [0], [1], [0, 0, 1, 1], [], []>} : vector<1x32xf32>, vector<32x128xf32>, vector<1x128xf32> -> vector<1x128xf32>
    %72 = arith.addf %70, %71 : vector<1x128xf32>
    %73 = arith.negf %72 : vector<1x128xf32>
    %74 = math.exp %73 : vector<1x128xf32>
    %cst_31 = arith.constant 1.000000e+00 : f32
    %75 = vector.broadcast %cst_31 : f32 to vector<1x128xf32>
    %76 = arith.addf %75, %74 : vector<1x128xf32>
    %77 = arith.divf %75, %76 : vector<1x128xf32>
    %78 = math.tanh %72 : vector<1x128xf32>
    %79 = vector.extract_strided_slice %77 {offsets = [0, 32], sizes = [1, 32], strides = [1, 1]} : vector<1x128xf32> to vector<1x32xf32>
    %80 = arith.mulf %79, %68 : vector<1x32xf32>
    %81 = vector.extract_strided_slice %77 {offsets = [0, 0], sizes = [1, 32], strides = [1, 1]} : vector<1x128xf32> to vector<1x32xf32>
    %82 = vector.extract_strided_slice %78 {offsets = [0, 96], sizes = [1, 32], strides = [1, 1]} : vector<1x128xf32> to vector<1x32xf32>
    %83 = arith.mulf %81, %82 : vector<1x32xf32>
    %84 = arith.addf %80, %83 : vector<1x32xf32>
    %85 = vector.extract_strided_slice %77 {offsets = [0, 64], sizes = [1, 32], strides = [1, 1]} : vector<1x128xf32> to vector<1x32xf32>
    %86 = math.tanh %84 : vector<1x32xf32>
    %87 = arith.mulf %85, %86 : vector<1x32xf32>
    %88 = vector.extract_strided_slice %63 {offsets = [1, 0], sizes = [1, 128], strides = [1, 1]} : vector<8x128xf32> to vector<1x128xf32>
    %cst_32 = arith.constant dense<0.000000e+00> : vector<1x128xf32>
    %89 = tpu.matmul %87, %59, %cst_32 {dimension_numbers = #tpu.dot_dimension_numbers<[1], [0], [0], [1], [0, 0, 1, 1], [], []>} : vector<1x32xf32>, vector<32x128xf32>, vector<1x128xf32> -> vector<1x128xf32>
    %90 = arith.addf %88, %89 : vector<1x128xf32>
    %91 = arith.negf %90 : vector<1x128xf32>
    %92 = math.exp %91 : vector<1x128xf32>
    %cst_33 = arith.constant 1.000000e+00 : f32
    %93 = vector.broadcast %cst_33 : f32 to vector<1x128xf32>
    %94 = arith.addf %93, %92 : vector<1x128xf32>
    %95 = arith.divf %93, %94 : vector<1x128xf32>
    %96 = math.tanh %90 : vector<1x128xf32>
    %97 = vector.extract_strided_slice %95 {offsets = [0, 32], sizes = [1, 32], strides = [1, 1]} : vector<1x128xf32> to vector<1x32xf32>
    %98 = arith.mulf %97, %84 : vector<1x32xf32>
    %99 = vector.extract_strided_slice %95 {offsets = [0, 0], sizes = [1, 32], strides = [1, 1]} : vector<1x128xf32> to vector<1x32xf32>
    %100 = vector.extract_strided_slice %96 {offsets = [0, 96], sizes = [1, 32], strides = [1, 1]} : vector<1x128xf32> to vector<1x32xf32>
    %101 = arith.mulf %99, %100 : vector<1x32xf32>
    %102 = arith.addf %98, %101 : vector<1x32xf32>
    %103 = vector.extract_strided_slice %95 {offsets = [0, 64], sizes = [1, 32], strides = [1, 1]} : vector<1x128xf32> to vector<1x32xf32>
    %104 = math.tanh %102 : vector<1x32xf32>
    %105 = arith.mulf %103, %104 : vector<1x32xf32>
    %106 = tpu.concatenate %87, %67 in 1 : vector<1x32xf32>, vector<1x32xf32> -> vector<1x64xf32>
    %cst_34 = arith.constant dense<0.000000e+00> : vector<1x128xf32>
    %107 = tpu.matmul %106, %64, %cst_34 {dimension_numbers = #tpu.dot_dimension_numbers<[1], [0], [0], [1], [0, 0, 1, 1], [], []>} : vector<1x64xf32>, vector<64x128xf32>, vector<1x128xf32> -> vector<1x128xf32>
    %108 = arith.addf %107, %65 : vector<1x128xf32>
    %109 = arith.negf %108 : vector<1x128xf32>
    %110 = math.exp %109 : vector<1x128xf32>
    %cst_35 = arith.constant 1.000000e+00 : f32
    %111 = vector.broadcast %cst_35 : f32 to vector<1x128xf32>
    %112 = arith.addf %111, %110 : vector<1x128xf32>
    %113 = arith.divf %111, %112 : vector<1x128xf32>
    %114 = math.tanh %108 : vector<1x128xf32>
    %115 = vector.extract_strided_slice %113 {offsets = [0, 32], sizes = [1, 32], strides = [1, 1]} : vector<1x128xf32> to vector<1x32xf32>
    %116 = arith.mulf %115, %69 : vector<1x32xf32>
    %117 = vector.extract_strided_slice %113 {offsets = [0, 0], sizes = [1, 32], strides = [1, 1]} : vector<1x128xf32> to vector<1x32xf32>
    %118 = vector.extract_strided_slice %114 {offsets = [0, 96], sizes = [1, 32], strides = [1, 1]} : vector<1x128xf32> to vector<1x32xf32>
    %119 = arith.mulf %117, %118 : vector<1x32xf32>
    %120 = arith.addf %116, %119 : vector<1x32xf32>
    %121 = vector.extract_strided_slice %113 {offsets = [0, 64], sizes = [1, 32], strides = [1, 1]} : vector<1x128xf32> to vector<1x32xf32>
    %122 = math.tanh %120 : vector<1x32xf32>
    %123 = arith.mulf %121, %122 : vector<1x32xf32>
    %124 = vector.extract_strided_slice %63 {offsets = [2, 0], sizes = [1, 128], strides = [1, 1]} : vector<8x128xf32> to vector<1x128xf32>
    %cst_36 = arith.constant dense<0.000000e+00> : vector<1x128xf32>
    %125 = tpu.matmul %105, %59, %cst_36 {dimension_numbers = #tpu.dot_dimension_numbers<[1], [0], [0], [1], [0, 0, 1, 1], [], []>} : vector<1x32xf32>, vector<32x128xf32>, vector<1x128xf32> -> vector<1x128xf32>
    %126 = arith.addf %124, %125 : vector<1x128xf32>
    %127 = arith.negf %126 : vector<1x128xf32>
    %128 = math.exp %127 : vector<1x128xf32>
    %cst_37 = arith.constant 1.000000e+00 : f32
    %129 = vector.broadcast %cst_37 : f32 to vector<1x128xf32>
    %130 = arith.addf %129, %128 : vector<1x128xf32>
    %131 = arith.divf %129, %130 : vector<1x128xf32>
    %132 = math.tanh %126 : vector<1x128xf32>
    %133 = vector.extract_strided_slice %131 {offsets = [0, 32], sizes = [1, 32], strides = [1, 1]} : vector<1x128xf32> to vector<1x32xf32>
    %134 = arith.mulf %133, %102 : vector<1x32xf32>
    %135 = vector.extract_strided_slice %131 {offsets = [0, 0], sizes = [1, 32], strides = [1, 1]} : vector<1x128xf32> to vector<1x32xf32>
    %136 = vector.extract_strided_slice %132 {offsets = [0, 96], sizes = [1, 32], strides = [1, 1]} : vector<1x128xf32> to vector<1x32xf32>
    %137 = arith.mulf %135, %136 : vector<1x32xf32>
    %138 = arith.addf %134, %137 : vector<1x32xf32>
    %139 = vector.extract_strided_slice %131 {offsets = [0, 64], sizes = [1, 32], strides = [1, 1]} : vector<1x128xf32> to vector<1x32xf32>
    %140 = math.tanh %138 : vector<1x32xf32>
    %141 = arith.mulf %139, %140 : vector<1x32xf32>
    %142 = tpu.concatenate %105, %123 in 1 : vector<1x32xf32>, vector<1x32xf32> -> vector<1x64xf32>
    %cst_38 = arith.constant dense<0.000000e+00> : vector<1x128xf32>
    %143 = tpu.matmul %142, %64, %cst_38 {dimension_numbers = #tpu.dot_dimension_numbers<[1], [0], [0], [1], [0, 0, 1, 1], [], []>} : vector<1x64xf32>, vector<64x128xf32>, vector<1x128xf32> -> vector<1x128xf32>
    %144 = arith.addf %143, %65 : vector<1x128xf32>
    %145 = arith.negf %144 : vector<1x128xf32>
    %146 = math.exp %145 : vector<1x128xf32>
    %cst_39 = arith.constant 1.000000e+00 : f32
    %147 = vector.broadcast %cst_39 : f32 to vector<1x128xf32>
    %148 = arith.addf %147, %146 : vector<1x128xf32>
    %149 = arith.divf %147, %148 : vector<1x128xf32>
    %150 = math.tanh %144 : vector<1x128xf32>
    %151 = vector.extract_strided_slice %149 {offsets = [0, 32], sizes = [1, 32], strides = [1, 1]} : vector<1x128xf32> to vector<1x32xf32>
    %152 = arith.mulf %151, %120 : vector<1x32xf32>
    %153 = vector.extract_strided_slice %149 {offsets = [0, 0], sizes = [1, 32], strides = [1, 1]} : vector<1x128xf32> to vector<1x32xf32>
    %154 = vector.extract_strided_slice %150 {offsets = [0, 96], sizes = [1, 32], strides = [1, 1]} : vector<1x128xf32> to vector<1x32xf32>
    %155 = arith.mulf %153, %154 : vector<1x32xf32>
    %156 = arith.addf %152, %155 : vector<1x32xf32>
    %157 = vector.extract_strided_slice %149 {offsets = [0, 64], sizes = [1, 32], strides = [1, 1]} : vector<1x128xf32> to vector<1x32xf32>
    %158 = math.tanh %156 : vector<1x32xf32>
    %159 = arith.mulf %157, %158 : vector<1x32xf32>
    %160 = vector.extract_strided_slice %63 {offsets = [3, 0], sizes = [1, 128], strides = [1, 1]} : vector<8x128xf32> to vector<1x128xf32>
    %cst_40 = arith.constant dense<0.000000e+00> : vector<1x128xf32>
    %161 = tpu.matmul %141, %59, %cst_40 {dimension_numbers = #tpu.dot_dimension_numbers<[1], [0], [0], [1], [0, 0, 1, 1], [], []>} : vector<1x32xf32>, vector<32x128xf32>, vector<1x128xf32> -> vector<1x128xf32>
    %162 = arith.addf %160, %161 : vector<1x128xf32>
    %163 = arith.negf %162 : vector<1x128xf32>
    %164 = math.exp %163 : vector<1x128xf32>
    %cst_41 = arith.constant 1.000000e+00 : f32
    %165 = vector.broadcast %cst_41 : f32 to vector<1x128xf32>
    %166 = arith.addf %165, %164 : vector<1x128xf32>
    %167 = arith.divf %165, %166 : vector<1x128xf32>
    %168 = math.tanh %162 : vector<1x128xf32>
    %169 = vector.extract_strided_slice %167 {offsets = [0, 32], sizes = [1, 32], strides = [1, 1]} : vector<1x128xf32> to vector<1x32xf32>
    %170 = arith.mulf %169, %138 : vector<1x32xf32>
    %171 = vector.extract_strided_slice %167 {offsets = [0, 0], sizes = [1, 32], strides = [1, 1]} : vector<1x128xf32> to vector<1x32xf32>
    %172 = vector.extract_strided_slice %168 {offsets = [0, 96], sizes = [1, 32], strides = [1, 1]} : vector<1x128xf32> to vector<1x32xf32>
    %173 = arith.mulf %171, %172 : vector<1x32xf32>
    %174 = arith.addf %170, %173 : vector<1x32xf32>
    %175 = vector.extract_strided_slice %167 {offsets = [0, 64], sizes = [1, 32], strides = [1, 1]} : vector<1x128xf32> to vector<1x32xf32>
    %176 = math.tanh %174 : vector<1x32xf32>
    %177 = arith.mulf %175, %176 : vector<1x32xf32>
    %178 = tpu.concatenate %141, %159 in 1 : vector<1x32xf32>, vector<1x32xf32> -> vector<1x64xf32>
    %cst_42 = arith.constant dense<0.000000e+00> : vector<1x128xf32>
    %179 = tpu.matmul %178, %64, %cst_42 {dimension_numbers = #tpu.dot_dimension_numbers<[1], [0], [0], [1], [0, 0, 1, 1], [], []>} : vector<1x64xf32>, vector<64x128xf32>, vector<1x128xf32> -> vector<1x128xf32>
    %180 = arith.addf %179, %65 : vector<1x128xf32>
    %181 = arith.negf %180 : vector<1x128xf32>
    %182 = math.exp %181 : vector<1x128xf32>
    %cst_43 = arith.constant 1.000000e+00 : f32
    %183 = vector.broadcast %cst_43 : f32 to vector<1x128xf32>
    %184 = arith.addf %183, %182 : vector<1x128xf32>
    %185 = arith.divf %183, %184 : vector<1x128xf32>
    %186 = math.tanh %180 : vector<1x128xf32>
    %187 = vector.extract_strided_slice %185 {offsets = [0, 32], sizes = [1, 32], strides = [1, 1]} : vector<1x128xf32> to vector<1x32xf32>
    %188 = arith.mulf %187, %156 : vector<1x32xf32>
    %189 = vector.extract_strided_slice %185 {offsets = [0, 0], sizes = [1, 32], strides = [1, 1]} : vector<1x128xf32> to vector<1x32xf32>
    %190 = vector.extract_strided_slice %186 {offsets = [0, 96], sizes = [1, 32], strides = [1, 1]} : vector<1x128xf32> to vector<1x32xf32>
    %191 = arith.mulf %189, %190 : vector<1x32xf32>
    %192 = arith.addf %188, %191 : vector<1x32xf32>
    %193 = vector.extract_strided_slice %185 {offsets = [0, 64], sizes = [1, 32], strides = [1, 1]} : vector<1x128xf32> to vector<1x32xf32>
    %194 = math.tanh %192 : vector<1x32xf32>
    %195 = arith.mulf %193, %194 : vector<1x32xf32>
    %196 = vector.extract_strided_slice %63 {offsets = [4, 0], sizes = [1, 128], strides = [1, 1]} : vector<8x128xf32> to vector<1x128xf32>
    %cst_44 = arith.constant dense<0.000000e+00> : vector<1x128xf32>
    %197 = tpu.matmul %177, %59, %cst_44 {dimension_numbers = #tpu.dot_dimension_numbers<[1], [0], [0], [1], [0, 0, 1, 1], [], []>} : vector<1x32xf32>, vector<32x128xf32>, vector<1x128xf32> -> vector<1x128xf32>
    %198 = arith.addf %196, %197 : vector<1x128xf32>
    %199 = arith.negf %198 : vector<1x128xf32>
    %200 = math.exp %199 : vector<1x128xf32>
    %cst_45 = arith.constant 1.000000e+00 : f32
    %201 = vector.broadcast %cst_45 : f32 to vector<1x128xf32>
    %202 = arith.addf %201, %200 : vector<1x128xf32>
    %203 = arith.divf %201, %202 : vector<1x128xf32>
    %204 = math.tanh %198 : vector<1x128xf32>
    %205 = vector.extract_strided_slice %203 {offsets = [0, 32], sizes = [1, 32], strides = [1, 1]} : vector<1x128xf32> to vector<1x32xf32>
    %206 = arith.mulf %205, %174 : vector<1x32xf32>
    %207 = vector.extract_strided_slice %203 {offsets = [0, 0], sizes = [1, 32], strides = [1, 1]} : vector<1x128xf32> to vector<1x32xf32>
    %208 = vector.extract_strided_slice %204 {offsets = [0, 96], sizes = [1, 32], strides = [1, 1]} : vector<1x128xf32> to vector<1x32xf32>
    %209 = arith.mulf %207, %208 : vector<1x32xf32>
    %210 = arith.addf %206, %209 : vector<1x32xf32>
    %211 = vector.extract_strided_slice %203 {offsets = [0, 64], sizes = [1, 32], strides = [1, 1]} : vector<1x128xf32> to vector<1x32xf32>
    %212 = math.tanh %210 : vector<1x32xf32>
    %213 = arith.mulf %211, %212 : vector<1x32xf32>
    %214 = tpu.concatenate %177, %195 in 1 : vector<1x32xf32>, vector<1x32xf32> -> vector<1x64xf32>
    %cst_46 = arith.constant dense<0.000000e+00> : vector<1x128xf32>
    %215 = tpu.matmul %214, %64, %cst_46 {dimension_numbers = #tpu.dot_dimension_numbers<[1], [0], [0], [1], [0, 0, 1, 1], [], []>} : vector<1x64xf32>, vector<64x128xf32>, vector<1x128xf32> -> vector<1x128xf32>
    %216 = arith.addf %215, %65 : vector<1x128xf32>
    %217 = arith.negf %216 : vector<1x128xf32>
    %218 = math.exp %217 : vector<1x128xf32>
    %cst_47 = arith.constant 1.000000e+00 : f32
    %219 = vector.broadcast %cst_47 : f32 to vector<1x128xf32>
    %220 = arith.addf %219, %218 : vector<1x128xf32>
    %221 = arith.divf %219, %220 : vector<1x128xf32>
    %222 = math.tanh %216 : vector<1x128xf32>
    %223 = vector.extract_strided_slice %221 {offsets = [0, 32], sizes = [1, 32], strides = [1, 1]} : vector<1x128xf32> to vector<1x32xf32>
    %224 = arith.mulf %223, %192 : vector<1x32xf32>
    %225 = vector.extract_strided_slice %221 {offsets = [0, 0], sizes = [1, 32], strides = [1, 1]} : vector<1x128xf32> to vector<1x32xf32>
    %226 = vector.extract_strided_slice %222 {offsets = [0, 96], sizes = [1, 32], strides = [1, 1]} : vector<1x128xf32> to vector<1x32xf32>
    %227 = arith.mulf %225, %226 : vector<1x32xf32>
    %228 = arith.addf %224, %227 : vector<1x32xf32>
    %229 = vector.extract_strided_slice %221 {offsets = [0, 64], sizes = [1, 32], strides = [1, 1]} : vector<1x128xf32> to vector<1x32xf32>
    %230 = math.tanh %228 : vector<1x32xf32>
    %231 = arith.mulf %229, %230 : vector<1x32xf32>
    %232 = vector.extract_strided_slice %63 {offsets = [5, 0], sizes = [1, 128], strides = [1, 1]} : vector<8x128xf32> to vector<1x128xf32>
    %cst_48 = arith.constant dense<0.000000e+00> : vector<1x128xf32>
    %233 = tpu.matmul %213, %59, %cst_48 {dimension_numbers = #tpu.dot_dimension_numbers<[1], [0], [0], [1], [0, 0, 1, 1], [], []>} : vector<1x32xf32>, vector<32x128xf32>, vector<1x128xf32> -> vector<1x128xf32>
    %234 = arith.addf %232, %233 : vector<1x128xf32>
    %235 = arith.negf %234 : vector<1x128xf32>
    %236 = math.exp %235 : vector<1x128xf32>
    %cst_49 = arith.constant 1.000000e+00 : f32
    %237 = vector.broadcast %cst_49 : f32 to vector<1x128xf32>
    %238 = arith.addf %237, %236 : vector<1x128xf32>
    %239 = arith.divf %237, %238 : vector<1x128xf32>
    %240 = math.tanh %234 : vector<1x128xf32>
    %241 = vector.extract_strided_slice %239 {offsets = [0, 32], sizes = [1, 32], strides = [1, 1]} : vector<1x128xf32> to vector<1x32xf32>
    %242 = arith.mulf %241, %210 : vector<1x32xf32>
    %243 = vector.extract_strided_slice %239 {offsets = [0, 0], sizes = [1, 32], strides = [1, 1]} : vector<1x128xf32> to vector<1x32xf32>
    %244 = vector.extract_strided_slice %240 {offsets = [0, 96], sizes = [1, 32], strides = [1, 1]} : vector<1x128xf32> to vector<1x32xf32>
    %245 = arith.mulf %243, %244 : vector<1x32xf32>
    %246 = arith.addf %242, %245 : vector<1x32xf32>
    %247 = vector.extract_strided_slice %239 {offsets = [0, 64], sizes = [1, 32], strides = [1, 1]} : vector<1x128xf32> to vector<1x32xf32>
    %248 = math.tanh %246 : vector<1x32xf32>
    %249 = arith.mulf %247, %248 : vector<1x32xf32>
    %250 = tpu.concatenate %213, %231 in 1 : vector<1x32xf32>, vector<1x32xf32> -> vector<1x64xf32>
    %cst_50 = arith.constant dense<0.000000e+00> : vector<1x128xf32>
    %251 = tpu.matmul %250, %64, %cst_50 {dimension_numbers = #tpu.dot_dimension_numbers<[1], [0], [0], [1], [0, 0, 1, 1], [], []>} : vector<1x64xf32>, vector<64x128xf32>, vector<1x128xf32> -> vector<1x128xf32>
    %252 = arith.addf %251, %65 : vector<1x128xf32>
    %253 = arith.negf %252 : vector<1x128xf32>
    %254 = math.exp %253 : vector<1x128xf32>
    %cst_51 = arith.constant 1.000000e+00 : f32
    %255 = vector.broadcast %cst_51 : f32 to vector<1x128xf32>
    %256 = arith.addf %255, %254 : vector<1x128xf32>
    %257 = arith.divf %255, %256 : vector<1x128xf32>
    %258 = math.tanh %252 : vector<1x128xf32>
    %259 = vector.extract_strided_slice %257 {offsets = [0, 32], sizes = [1, 32], strides = [1, 1]} : vector<1x128xf32> to vector<1x32xf32>
    %260 = arith.mulf %259, %228 : vector<1x32xf32>
    %261 = vector.extract_strided_slice %257 {offsets = [0, 0], sizes = [1, 32], strides = [1, 1]} : vector<1x128xf32> to vector<1x32xf32>
    %262 = vector.extract_strided_slice %258 {offsets = [0, 96], sizes = [1, 32], strides = [1, 1]} : vector<1x128xf32> to vector<1x32xf32>
    %263 = arith.mulf %261, %262 : vector<1x32xf32>
    %264 = arith.addf %260, %263 : vector<1x32xf32>
    %265 = vector.extract_strided_slice %257 {offsets = [0, 64], sizes = [1, 32], strides = [1, 1]} : vector<1x128xf32> to vector<1x32xf32>
    %266 = math.tanh %264 : vector<1x32xf32>
    %267 = arith.mulf %265, %266 : vector<1x32xf32>
    %268 = vector.extract_strided_slice %63 {offsets = [6, 0], sizes = [1, 128], strides = [1, 1]} : vector<8x128xf32> to vector<1x128xf32>
    %cst_52 = arith.constant dense<0.000000e+00> : vector<1x128xf32>
    %269 = tpu.matmul %249, %59, %cst_52 {dimension_numbers = #tpu.dot_dimension_numbers<[1], [0], [0], [1], [0, 0, 1, 1], [], []>} : vector<1x32xf32>, vector<32x128xf32>, vector<1x128xf32> -> vector<1x128xf32>
    %270 = arith.addf %268, %269 : vector<1x128xf32>
    %271 = arith.negf %270 : vector<1x128xf32>
    %272 = math.exp %271 : vector<1x128xf32>
    %cst_53 = arith.constant 1.000000e+00 : f32
    %273 = vector.broadcast %cst_53 : f32 to vector<1x128xf32>
    %274 = arith.addf %273, %272 : vector<1x128xf32>
    %275 = arith.divf %273, %274 : vector<1x128xf32>
    %276 = math.tanh %270 : vector<1x128xf32>
    %277 = vector.extract_strided_slice %275 {offsets = [0, 32], sizes = [1, 32], strides = [1, 1]} : vector<1x128xf32> to vector<1x32xf32>
    %278 = arith.mulf %277, %246 : vector<1x32xf32>
    %279 = vector.extract_strided_slice %275 {offsets = [0, 0], sizes = [1, 32], strides = [1, 1]} : vector<1x128xf32> to vector<1x32xf32>
    %280 = vector.extract_strided_slice %276 {offsets = [0, 96], sizes = [1, 32], strides = [1, 1]} : vector<1x128xf32> to vector<1x32xf32>
    %281 = arith.mulf %279, %280 : vector<1x32xf32>
    %282 = arith.addf %278, %281 : vector<1x32xf32>
    %283 = vector.extract_strided_slice %275 {offsets = [0, 64], sizes = [1, 32], strides = [1, 1]} : vector<1x128xf32> to vector<1x32xf32>
    %284 = math.tanh %282 : vector<1x32xf32>
    %285 = arith.mulf %283, %284 : vector<1x32xf32>
    %286 = tpu.concatenate %249, %267 in 1 : vector<1x32xf32>, vector<1x32xf32> -> vector<1x64xf32>
    %cst_54 = arith.constant dense<0.000000e+00> : vector<1x128xf32>
    %287 = tpu.matmul %286, %64, %cst_54 {dimension_numbers = #tpu.dot_dimension_numbers<[1], [0], [0], [1], [0, 0, 1, 1], [], []>} : vector<1x64xf32>, vector<64x128xf32>, vector<1x128xf32> -> vector<1x128xf32>
    %288 = arith.addf %287, %65 : vector<1x128xf32>
    %289 = arith.negf %288 : vector<1x128xf32>
    %290 = math.exp %289 : vector<1x128xf32>
    %cst_55 = arith.constant 1.000000e+00 : f32
    %291 = vector.broadcast %cst_55 : f32 to vector<1x128xf32>
    %292 = arith.addf %291, %290 : vector<1x128xf32>
    %293 = arith.divf %291, %292 : vector<1x128xf32>
    %294 = math.tanh %288 : vector<1x128xf32>
    %295 = vector.extract_strided_slice %293 {offsets = [0, 32], sizes = [1, 32], strides = [1, 1]} : vector<1x128xf32> to vector<1x32xf32>
    %296 = arith.mulf %295, %264 : vector<1x32xf32>
    %297 = vector.extract_strided_slice %293 {offsets = [0, 0], sizes = [1, 32], strides = [1, 1]} : vector<1x128xf32> to vector<1x32xf32>
    %298 = vector.extract_strided_slice %294 {offsets = [0, 96], sizes = [1, 32], strides = [1, 1]} : vector<1x128xf32> to vector<1x32xf32>
    %299 = arith.mulf %297, %298 : vector<1x32xf32>
    %300 = arith.addf %296, %299 : vector<1x32xf32>
    %301 = vector.extract_strided_slice %293 {offsets = [0, 64], sizes = [1, 32], strides = [1, 1]} : vector<1x128xf32> to vector<1x32xf32>
    %302 = math.tanh %300 : vector<1x32xf32>
    %303 = arith.mulf %301, %302 : vector<1x32xf32>
    %304 = vector.extract_strided_slice %63 {offsets = [7, 0], sizes = [1, 128], strides = [1, 1]} : vector<8x128xf32> to vector<1x128xf32>
    %cst_56 = arith.constant dense<0.000000e+00> : vector<1x128xf32>
    %305 = tpu.matmul %285, %59, %cst_56 {dimension_numbers = #tpu.dot_dimension_numbers<[1], [0], [0], [1], [0, 0, 1, 1], [], []>} : vector<1x32xf32>, vector<32x128xf32>, vector<1x128xf32> -> vector<1x128xf32>
    %306 = arith.addf %304, %305 : vector<1x128xf32>
    %307 = arith.negf %306 : vector<1x128xf32>
    %308 = math.exp %307 : vector<1x128xf32>
    %cst_57 = arith.constant 1.000000e+00 : f32
    %309 = vector.broadcast %cst_57 : f32 to vector<1x128xf32>
    %310 = arith.addf %309, %308 : vector<1x128xf32>
    %311 = arith.divf %309, %310 : vector<1x128xf32>
    %312 = math.tanh %306 : vector<1x128xf32>
    %313 = vector.extract_strided_slice %311 {offsets = [0, 32], sizes = [1, 32], strides = [1, 1]} : vector<1x128xf32> to vector<1x32xf32>
    %314 = arith.mulf %313, %282 : vector<1x32xf32>
    %315 = vector.extract_strided_slice %311 {offsets = [0, 0], sizes = [1, 32], strides = [1, 1]} : vector<1x128xf32> to vector<1x32xf32>
    %316 = vector.extract_strided_slice %312 {offsets = [0, 96], sizes = [1, 32], strides = [1, 1]} : vector<1x128xf32> to vector<1x32xf32>
    %317 = arith.mulf %315, %316 : vector<1x32xf32>
    %318 = arith.addf %314, %317 : vector<1x32xf32>
    %319 = vector.extract_strided_slice %311 {offsets = [0, 64], sizes = [1, 32], strides = [1, 1]} : vector<1x128xf32> to vector<1x32xf32>
    %320 = math.tanh %318 : vector<1x32xf32>
    %321 = arith.mulf %319, %320 : vector<1x32xf32>
    %322 = tpu.concatenate %285, %303 in 1 : vector<1x32xf32>, vector<1x32xf32> -> vector<1x64xf32>
    %cst_58 = arith.constant dense<0.000000e+00> : vector<1x128xf32>
    %323 = tpu.matmul %322, %64, %cst_58 {dimension_numbers = #tpu.dot_dimension_numbers<[1], [0], [0], [1], [0, 0, 1, 1], [], []>} : vector<1x64xf32>, vector<64x128xf32>, vector<1x128xf32> -> vector<1x128xf32>
    %324 = arith.addf %323, %65 : vector<1x128xf32>
    %325 = arith.negf %324 : vector<1x128xf32>
    %326 = math.exp %325 : vector<1x128xf32>
    %cst_59 = arith.constant 1.000000e+00 : f32
    %327 = vector.broadcast %cst_59 : f32 to vector<1x128xf32>
    %328 = arith.addf %327, %326 : vector<1x128xf32>
    %329 = arith.divf %327, %328 : vector<1x128xf32>
    %330 = math.tanh %324 : vector<1x128xf32>
    %331 = vector.extract_strided_slice %329 {offsets = [0, 32], sizes = [1, 32], strides = [1, 1]} : vector<1x128xf32> to vector<1x32xf32>
    %332 = arith.mulf %331, %300 : vector<1x32xf32>
    %333 = vector.extract_strided_slice %329 {offsets = [0, 0], sizes = [1, 32], strides = [1, 1]} : vector<1x128xf32> to vector<1x32xf32>
    %334 = vector.extract_strided_slice %330 {offsets = [0, 96], sizes = [1, 32], strides = [1, 1]} : vector<1x128xf32> to vector<1x32xf32>
    %335 = arith.mulf %333, %334 : vector<1x32xf32>
    %336 = arith.addf %332, %335 : vector<1x32xf32>
    %337 = vector.extract_strided_slice %329 {offsets = [0, 64], sizes = [1, 32], strides = [1, 1]} : vector<1x128xf32> to vector<1x32xf32>
    %338 = math.tanh %336 : vector<1x32xf32>
    %339 = arith.mulf %337, %338 : vector<1x32xf32>
    %340 = tpu.concatenate %321, %339 in 1 : vector<1x32xf32>, vector<1x32xf32> -> vector<1x64xf32>
    %cst_60 = arith.constant dense<0.000000e+00> : vector<1x128xf32>
    %341 = tpu.matmul %340, %64, %cst_60 {dimension_numbers = #tpu.dot_dimension_numbers<[1], [0], [0], [1], [0, 0, 1, 1], [], []>} : vector<1x64xf32>, vector<64x128xf32>, vector<1x128xf32> -> vector<1x128xf32>
    %342 = arith.addf %341, %65 : vector<1x128xf32>
    %343 = arith.negf %342 : vector<1x128xf32>
    %344 = math.exp %343 : vector<1x128xf32>
    %cst_61 = arith.constant 1.000000e+00 : f32
    %345 = vector.broadcast %cst_61 : f32 to vector<1x128xf32>
    %346 = arith.addf %345, %344 : vector<1x128xf32>
    %347 = arith.divf %345, %346 : vector<1x128xf32>
    %348 = math.tanh %342 : vector<1x128xf32>
    %349 = vector.extract_strided_slice %347 {offsets = [0, 32], sizes = [1, 32], strides = [1, 1]} : vector<1x128xf32> to vector<1x32xf32>
    %350 = arith.mulf %349, %336 : vector<1x32xf32>
    %351 = vector.extract_strided_slice %347 {offsets = [0, 0], sizes = [1, 32], strides = [1, 1]} : vector<1x128xf32> to vector<1x32xf32>
    %352 = vector.extract_strided_slice %348 {offsets = [0, 96], sizes = [1, 32], strides = [1, 1]} : vector<1x128xf32> to vector<1x32xf32>
    %353 = arith.mulf %351, %352 : vector<1x32xf32>
    %354 = arith.addf %350, %353 : vector<1x32xf32>
    %355 = vector.extract_strided_slice %347 {offsets = [0, 64], sizes = [1, 32], strides = [1, 1]} : vector<1x128xf32> to vector<1x32xf32>
    %356 = math.tanh %354 : vector<1x32xf32>
    %357 = arith.mulf %355, %356 : vector<1x32xf32>
    %c256 = arith.constant 256 : index
    %c0_62 = arith.constant 0 : index
    %358 = vector.load %arg1[%c256, %c0_62] : memref<288x128xf32, #tpu.memory_space<vmem>>, vector<32x128xf32>
    %c5 = arith.constant 5 : index
    %c0_63 = arith.constant 0 : index
    %359 = vector.load %arg2[%c5, %c0_63] : memref<6x128xf32, #tpu.memory_space<vmem>>, vector<1x128xf32>
    %cst_64 = arith.constant dense<0.000000e+00> : vector<1x128xf32>
    %360 = tpu.matmul %357, %358, %cst_64 {dimension_numbers = #tpu.dot_dimension_numbers<[1], [0], [0], [1], [0, 0, 1, 1], [], []>} : vector<1x32xf32>, vector<32x128xf32>, vector<1x128xf32> -> vector<1x128xf32>
    %361 = arith.addf %360, %359 : vector<1x128xf32>
    %c0_65 = arith.constant 0 : index
    %c0_66 = arith.constant 0 : index
    %362 = vector.load %arg3[%c0_65, %c0_66] : memref<1x128xf32, #tpu.memory_space<vmem>>, vector<1x128xf32>
    tpu.vector_store %arg3[%c0_65, %c0_66], %361 {strides = array<i32>} : memref<1x128xf32, #tpu.memory_space<vmem>>, vector<1x128xf32>,
    return
  }
}

</mosaic_0001>

<llo_original>
// kernel: tpu_custom_call.1
$region0: #{tpu_custom_call.1}
  #allocation0 [shape = 'u32[]', space=smem, size = 0x4, offset = 0x4, fixed_abs, tag = 'smem constant byte address 0x4 - core index']
  #allocation1 [shape = 'u32[144,128]{1,0:T(1,128)}', space=vmem, size = 0x12000, scoped, tag = 'internal scratch']
  %s0 = inlined_call_operand.vmem [shape: f32[144,64], index: 0, kind: input, shape index: {}]
  %s1 = inlined_call_operand.hbm [shape: f32[288,128], index: 1, kind: input, shape index: {}]
  %s2 = inlined_call_operand.vmem [shape: f32[6,128], index: 2, kind: input, shape index: {}]
  %s3 = inlined_call_operand.hbm [shape: f32[1,128], index: 3, kind: output, shape index: {}]
  %s4 = sld [smem:[#allocation0]]
  $region26: #{tpu_custom_call.1} parent=0
    _
  %s6 = ssub.s32 1, %s4
  %s7 = scalar_select 0, %s6, %s4
  $region1: #{tpu_custom_call.1} parent=0
    #allocation2 [shape = 'u8[147456]{0}', space=vmem, size = 0x24000, scoped, tag = 'input window, operand 1, single buffered']
    #allocation3 [shape = 's32[1]{0}', space=sflag, size = 0x4, scoped, tag = 'scoped memory for tpu_custom_call.1']
    #allocation4 [shape = 's32[1]{0}', space=sflag, size = 0x4, scoped, tag = 'scoped memory for tpu_custom_call.1']
    #allocation5 [shape = 'u8[512]{0}', space=vmem, size = 0x400, scoped, tag = 'output window, operand 0, single buffered']
    %8 = vsyncpa [#allocation3], 0
    %9 = vsyncpa [#allocation4], 0
    // Predicated region
    $region2: #{tpu_custom_call.1} parent=1 // pred_check
      _
    $region3: #{tpu_custom_call.1} parent=1 // pred_check_branch
      %11 = sbr.rel (0) target = $region5
    $region4: #{tpu_custom_call.1} parent=1 // pred_region
      _
    $region5: #{tpu_custom_call.1} parent=1 // pred_fallthru
      _
    // Predicated region
    $region6: #{tpu_custom_call.1} parent=1 // pred_check
      _
    $region7: #{tpu_custom_call.1} parent=1 // pred_check_branch
      %13 = sbr.rel (0) target = $region9
    $region8: #{tpu_custom_call.1} parent=1 // pred_region
      %s15 = ssub.s32 4608, 4608
      %16 = vsyncadd [#allocation3], %s15
      %s17 = sshll.u32 [#allocation2], 4
      %s18 = int_to_ptr.vmem [resolvable:$true] %s17
      %23 = dma.hbm_to_vmem [thread:$0]  %s1, 4608, %s18, [#allocation3], 128, 128, 8
    $region9: #{tpu_custom_call.1} parent=1 // pred_fallthru
      _
    // Predicated region
    $region10: #{tpu_custom_call.1} parent=1 // pred_check
      _
    $region11: #{tpu_custom_call.1} parent=1 // pred_check_branch
      %25 = sbr.rel (0) target = $region13
    $region12: #{tpu_custom_call.1} parent=1 // pred_region
      _
    $region13: #{tpu_custom_call.1} parent=1 // pred_fallthru
      _
    // Predicated region
    $region14: #{tpu_custom_call.1} parent=1 // pred_check
      _
    $region15: #{tpu_custom_call.1} parent=1 // pred_check_branch
      %27 = sbr.rel (0) target = $region17
    $region16: #{tpu_custom_call.1} parent=1 // pred_region
      %28 = dma.done [#allocation3], 4608
    $region17: #{tpu_custom_call.1} parent=1 // pred_fallthru
      _
    %v29 = vld [vmem:[#allocation2] sm:$0xff]
    %v30 = vld [vmem:[#allocation2 + $0x8] sm:$0xff]
    %v31 = vld [vmem:[#allocation2 + $0x10] sm:$0xff]
    %v32 = vld [vmem:[#allocation2 + $0x18] sm:$0xff]
    %v33 = vld [vmem:[#allocation2 + $0x20] sm:$0xff]
    %v34 = vld [vmem:[#allocation2 + $0x28] sm:$0xff]
    %v35 = vld [vmem:[#allocation2 + $0x30] sm:$0xff]
    %v36 = vld [vmem:[#allocation2 + $0x38] sm:$0xff]
    %v37 = vld [vmem:[%s0] sm:$0xff]
    %v38 = vld [vmem:[%s0 + $0x8] sm:$0xff]
    %v39 = vld [vmem:[%s0 + $0x10] sm:$0xff]
    %v40 = vld [vmem:[%s0 + $0x18] sm:$0xff]
    %v41 = vld [vmem:[%s0 + $0x20] sm:$0xff]
    %v42 = vld [vmem:[%s0 + $0x28] sm:$0xff]
    %v43 = vld [vmem:[%s0 + $0x30] sm:$0xff]
    %v44 = vld [vmem:[%s0 + $0x38] sm:$0xff]
    %v45 = vld [vmem:[%s0 + $0x40] sm:$0xff]
    %v46 = vld [vmem:[%s0 + $0x48] sm:$0xff]
    %v47 = vld [vmem:[%s0 + $0x50] sm:$0xff]
    %v48 = vld [vmem:[%s0 + $0x58] sm:$0xff]
    %v49 = vld [vmem:[%s0 + $0x60] sm:$0xff]
    %v50 = vld [vmem:[%s0 + $0x68] sm:$0xff]
    %v51 = vld [vmem:[%s0 + $0x70] sm:$0xff]
    %v52 = vld [vmem:[%s0 + $0x78] sm:$0xff]
    %v53 = vld [vmem:[%s0 + $0x80] sm:$0xff]
    %v54 = vld [vmem:[%s0 + $0x88] sm:$0xff]
    %vm55 = vcmask 523264
    %v57 = vsel %vm55, %v37, 0
    %v60 = vsel %vm55, %v38, 0
    %v63 = vsel %vm55, %v39, 0
    %v66 = vsel %vm55, %v40, 0
    %v69 = vsel %vm55, %v41, 0
    %v72 = vsel %vm55, %v42, 0
    %v75 = vsel %vm55, %v43, 0
    %v78 = vsel %vm55, %v44, 0
    %v81 = vsel %vm55, %v45, 0
    %v84 = vsel %vm55, %v46, 0
    %v87 = vsel %vm55, %v47, 0
    %v90 = vsel %vm55, %v48, 0
    %v93 = vsel %vm55, %v49, 0
    %v96 = vsel %vm55, %v50, 0
    %v99 = vsel %vm55, %v51, 0
    %v102 = vsel %vm55, %v52, 0
    %v105 = vsel %vm55, %v53, 0
    %v108 = vsel %vm55, %v54, 0
    %110 = vmatprep.subr.mxu0 0.0
    %111 = vmatpush1.msra.mxu0 %v29
    %112 = vmatprep.subr.mxu0 0.0
    %113 = vmatpush1.msra.mxu0 %v30
    %114 = vmatprep.subr.mxu0 0.0
    %115 = vmatpush1.msra.mxu0 %v31
    %116 = vmatprep.subr.mxu0 0.0
    %117 = vmatpush1.msra.mxu0 %v32
    %118 = vmatprep.subr.mxu0 0.0
    %119 = vmatpush1.msra.mxu0 %v33
    %120 = vmatprep.subr.mxu0 0.0
    %121 = vmatpush1.msra.mxu0 %v34
    %122 = vmatprep.subr.mxu0 0.0
    %123 = vmatpush1.msra.mxu0 %v35
    %124 = vmatprep.subr.mxu0 0.0
    %125 = vmatpush1.msra.mxu0 %v36
    %126 = vmatprep.subr.mxu0 0.0
    %127 = vmatpush1.msra.mxu0 0.0
    %128 = vmatprep.subr.mxu0 0.0
    %129 = vmatpush1.msra.mxu0 0.0
    %130 = vmatprep.subr.mxu0 0.0
    %131 = vmatpush1.msra.mxu0 0.0
    %132 = vmatprep.subr.mxu0 0.0
    %133 = vmatpush1.msra.mxu0 0.0
    %134 = vmatprep.subr.mxu0 0.0
    %135 = vmatpush1.msra.mxu0 0.0
    %136 = vmatprep.subr.mxu0 0.0
    %137 = vmatpush1.msra.mxu0 0.0
    %138 = vmatprep.subr.mxu0 0.0
    %139 = vmatpush1.msra.mxu0 0.0
    %140 = vmatprep.subr.mxu0 0.0
    %141 = vmatpush1.msra.mxu0 0.0
    %142 = vmatprep.subr.mxu0 0.0
    %143 = vmatpush1.msra.mxu0 0.0
    %144 = vmatprep.subr.mxu0 0.0
    %145 = vmatpush1.msra.mxu0 0.0
    %146 = vmatprep.subr.mxu0 0.0
    %147 = vmatpush1.msra.mxu0 0.0
    %148 = vmatprep.subr.mxu0 0.0
    %149 = vmatpush1.msra.mxu0 0.0
    %150 = vmatprep.subr.mxu0 0.0
    %151 = vmatpush1.msra.mxu0 0.0
    %152 = vmatprep.subr.mxu0 0.0
    %153 = vmatpush1.msra.mxu0 0.0
    %154 = vmatprep.subr.mxu0 0.0
    %155 = vmatpush1.msra.mxu0 0.0
    %156 = vmatprep.subr.mxu0 0.0
    %157 = vmatpush1.msra.mxu0 0.0
    %158 = vmatprep.subr.mxu0 0.0
    %159 = vmatpush1.msra.mxu0 0.0
    %160 = vmatprep.subr.mxu0 0.0
    %161 = vmatpush1.msra.mxu0 0.0
    %162 = vmatprep.subr.mxu0 0.0
    %163 = vmatpush1.msra.mxu0 0.0
    %164 = vmatprep.subr.mxu0 0.0
    %165 = vmatpush1.msra.mxu0 0.0
    %166 = vmatprep.subr.mxu0 0.0
    %167 = vmatpush1.msra.mxu0 0.0
    %168 = vmatprep.subr.mxu0 0.0
    %169 = vmatpush1.msra.mxu0 0.0
    %170 = vmatprep.subr.mxu0 0.0
    %171 = vmatpush1.msra.mxu0 0.0
    %172 = vmatprep.subr.mxu0 0.0
    %173 = vmatpush1.msra.mxu0 0.0
    %174 = vmatprep.mubr.f32.mxu0 0.0
    %175 = vmatmul.mubr.f32.gmra.mrb[0].mxu0 %v57
    %v176 = vpop.f32.mrb[0].mxu0
    %v177 = vadd.f32 0.0, %v176
    %v178 = vpop.f32.mrb[0].mxu0
    %179 = vmatprep.mubr.f32.mxu0 0.0
    %180 = vmatmul.mubr.f32.gmra.mrb[0].mxu0 %v60
    %v181 = vpop.f32.mrb[0].mxu0
    %v182 = vadd.f32 0.0, %v181
    %v183 = vpop.f32.mrb[0].mxu0
    %184 = vmatprep.mubr.f32.mxu0 0.0
    %185 = vmatmul.mubr.f32.gmra.mrb[0].mxu0 %v63
    %v186 = vpop.f32.mrb[0].mxu0
    %v187 = vadd.f32 0.0, %v186
    %v188 = vpop.f32.mrb[0].mxu0
    %189 = vmatprep.mubr.f32.mxu0 0.0
    %190 = vmatmul.mubr.f32.gmra.mrb[0].mxu0 %v66
    %v191 = vpop.f32.mrb[0].mxu0
    %v192 = vadd.f32 0.0, %v191
    %v193 = vpop.f32.mrb[0].mxu0
    %194 = vmatprep.mubr.f32.mxu0 0.0
    %195 = vmatmul.mubr.f32.gmra.mrb[0].mxu0 %v69
    %v196 = vpop.f32.mrb[0].mxu0
    %v197 = vadd.f32 0.0, %v196
    %v198 = vpop.f32.mrb[0].mxu0
    %199 = vmatprep.mubr.f32.mxu0 0.0
    %200 = vmatmul.mubr.f32.gmra.mrb[0].mxu0 %v72
    %v201 = vpop.f32.mrb[0].mxu0
    %v202 = vadd.f32 0.0, %v201
    %v203 = vpop.f32.mrb[0].mxu0
    %204 = vmatprep.mubr.f32.mxu0 0.0
    %205 = vmatmul.mubr.f32.gmra.mrb[0].mxu0 %v75
    %v206 = vpop.f32.mrb[0].mxu0
    %v207 = vadd.f32 0.0, %v206
    %v208 = vpop.f32.mrb[0].mxu0
    %209 = vmatprep.mubr.f32.mxu0 0.0
    %210 = vmatmul.mubr.f32.gmra.mrb[0].mxu0 %v78
    %v211 = vpop.f32.mrb[0].mxu0
    %v212 = vadd.f32 0.0, %v211
    %v213 = vpop.f32.mrb[0].mxu0
    %214 = vmatprep.mubr.f32.mxu0 0.0
    %215 = vmatmul.mubr.f32.gmra.mrb[0].mxu0 %v81
    %v216 = vpop.f32.mrb[0].mxu0
    %v217 = vadd.f32 0.0, %v216
    %v218 = vpop.f32.mrb[0].mxu0
    %219 = vmatprep.mubr.f32.mxu0 0.0
    %220 = vmatmul.mubr.f32.gmra.mrb[0].mxu0 %v84
    %v221 = vpop.f32.mrb[0].mxu0
    %v222 = vadd.f32 0.0, %v221
    %v223 = vpop.f32.mrb[0].mxu0
    %224 = vmatprep.mubr.f32.mxu0 0.0
    %225 = vmatmul.mubr.f32.gmra.mrb[0].mxu0 %v87
    %v226 = vpop.f32.mrb[0].mxu0
    %v227 = vadd.f32 0.0, %v226
    %v228 = vpop.f32.mrb[0].mxu0
    %229 = vmatprep.mubr.f32.mxu0 0.0
    %230 = vmatmul.mubr.f32.gmra.mrb[0].mxu0 %v90
    %v231 = vpop.f32.mrb[0].mxu0
    %v232 = vadd.f32 0.0, %v231
    %v233 = vpop.f32.mrb[0].mxu0
    %234 = vmatprep.mubr.f32.mxu0 0.0
    %235 = vmatmul.mubr.f32.gmra.mrb[0].mxu0 %v93
    %v236 = vpop.f32.mrb[0].mxu0
    %v237 = vadd.f32 0.0, %v236
    %v238 = vpop.f32.mrb[0].mxu0
    %239 = vmatprep.mubr.f32.mxu0 0.0
    %240 = vmatmul.mubr.f32.gmra.mrb[0].mxu0 %v96
    %v241 = vpop.f32.mrb[0].mxu0
    %v242 = vadd.f32 0.0, %v241
    %v243 = vpop.f32.mrb[0].mxu0
    %244 = vmatprep.mubr.f32.mxu0 0.0
    %245 = vmatmul.mubr.f32.gmra.mrb[0].mxu0 %v99
    %v246 = vpop.f32.mrb[0].mxu0
    %v247 = vadd.f32 0.0, %v246
    %v248 = vpop.f32.mrb[0].mxu0
    %249 = vmatprep.mubr.f32.mxu0 0.0
    %250 = vmatmul.mubr.f32.gmra.mrb[0].mxu0 %v102
    %v251 = vpop.f32.mrb[0].mxu0
    %v252 = vadd.f32 0.0, %v251
    %v253 = vpop.f32.mrb[0].mxu0
    %254 = vmatprep.mubr.f32.mxu0 0.0
    %255 = vmatmul.mubr.f32.gmra.mrb[0].mxu0 %v105
    %v256 = vpop.f32.mrb[0].mxu0
    %v257 = vadd.f32 0.0, %v256
    %v258 = vpop.f32.mrb[0].mxu0
    %259 = vmatprep.mubr.f32.mxu0 0.0
    %260 = vmatmul.mubr.f32.gmra.mrb[0].mxu0 %v108
    %v261 = vpop.f32.mrb[0].mxu0
    %v262 = vadd.f32 0.0, %v261
    %v263 = vpop.f32.mrb[0].mxu0
    %264 = vdwg.mxu0
    %v265 = vmax.f32 %v177, %v197
    %v266 = vmax.f32 %v182, %v202
    %v267 = vmax.f32 %v187, %v207
    %v268 = vmax.f32 %v265, %v266
    %v269 = vmax.f32 %v267, %v192
    %v270 = vmax.f32 %v268, %v269
    %v271 = vmax.f32 %v212, %v232
    %v272 = vmax.f32 %v217, %v237
    %v273 = vmax.f32 %v271, %v272
    %v274 = vmax.f32 %v222, %v227
    %v275 = vmax.f32 %v273, %v274
    %v276 = vmax.f32 %v242, %v262
    %v277 = vmax.f32 %v276, %v247
    %v278 = vmax.f32 %v252, %v257
    %v279 = vmax.f32 %v277, %v278
    %v280 = vld [vmem:[%s2] sm:$0x1]
    %vm281 = vcmask 64512
    %v282 = vsel %vm281, %v270, %v275
    %vm283 = vcmask 195584
    %v284 = vsel %vm283, %v282, %v279
    %v285 = vlaneseq
    %v286 = vshrl.u32 %v285, 7
    %v287 = vsub.s32 0, %v286
    %v288 = vrot.slane %v280, %v287
    %v289 = vadd.f32 %v284, %v288
    %v290 = vtanh.pop %v289
    %v291 = vld [vmem:[#allocation2 + $0x40] sm:$0xff]
    %v292 = vld [vmem:[#allocation2 + $0x48] sm:$0xff]
    %v293 = vld [vmem:[#allocation2 + $0x50] sm:$0xff]
    %v294 = vld [vmem:[#allocation2 + $0x58] sm:$0xff]
    %v295 = vld [vmem:[%s2 + $0x1] sm:$0x1]
    %v296 = vlaneseq
    %v297 = vshrl.u32 %v296, 7
    %v298 = vsub.s32 0, %v297
    %v299 = vrot.slane %v295, %v298
    %vm300 = vcmask 261120
    %v302 = vsel %vm300, %v290, 0
    %304 = vmatprep.subr.mxu0 0.0
    %305 = vmatpush1.msra.mxu0 %v291
    %306 = vmatprep.subr.mxu0 0.0
    %307 = vmatpush1.msra.mxu0 %v292
    %308 = vmatprep.subr.mxu0 0.0
    %309 = vmatpush1.msra.mxu0 %v293
    %310 = vmatprep.subr.mxu0 0.0
    %311 = vmatpush1.msra.mxu0 %v294
    %312 = vmatprep.subr.mxu0 0.0
    %313 = vmatpush1.msra.mxu0 0.0
    %314 = vmatprep.subr.mxu0 0.0
    %315 = vmatpush1.msra.mxu0 0.0
    %316 = vmatprep.subr.mxu0 0.0
    %317 = vmatpush1.msra.mxu0 0.0
    %318 = vmatprep.subr.mxu0 0.0
    %319 = vmatpush1.msra.mxu0 0.0
    %320 = vmatprep.subr.mxu0 0.0
    %321 = vmatpush1.msra.mxu0 0.0
    %322 = vmatprep.subr.mxu0 0.0
    %323 = vmatpush1.msra.mxu0 0.0
    %324 = vmatprep.subr.mxu0 0.0
    %325 = vmatpush1.msra.mxu0 0.0
    %326 = vmatprep.subr.mxu0 0.0
    %327 = vmatpush1.msra.mxu0 0.0
    %328 = vmatprep.subr.mxu0 0.0
    %329 = vmatpush1.msra.mxu0 0.0
    %330 = vmatprep.subr.mxu0 0.0
    %331 = vmatpush1.msra.mxu0 0.0
    %332 = vmatprep.subr.mxu0 0.0
    %333 = vmatpush1.msra.mxu0 0.0
    %334 = vmatprep.subr.mxu0 0.0
    %335 = vmatpush1.msra.mxu0 0.0
    %336 = vmatprep.subr.mxu0 0.0
    %337 = vmatpush1.msra.mxu0 0.0
    %338 = vmatprep.subr.mxu0 0.0
    %339 = vmatpush1.msra.mxu0 0.0
    %340 = vmatprep.subr.mxu0 0.0
    %341 = vmatpush1.msra.mxu0 0.0
    %342 = vmatprep.subr.mxu0 0.0
    %343 = vmatpush1.msra.mxu0 0.0
    %344 = vmatprep.subr.mxu0 0.0
    %345 = vmatpush1.msra.mxu0 0.0
    %346 = vmatprep.subr.mxu0 0.0
    %347 = vmatpush1.msra.mxu0 0.0
    %348 = vmatprep.subr.mxu0 0.0
    %349 = vmatpush1.msra.mxu0 0.0
    %350 = vmatprep.subr.mxu0 0.0
    %351 = vmatpush1.msra.mxu0 0.0
    %352 = vmatprep.subr.mxu0 0.0
    %353 = vmatpush1.msra.mxu0 0.0
    %354 = vmatprep.subr.mxu0 0.0
    %355 = vmatpush1.msra.mxu0 0.0
    %356 = vmatprep.subr.mxu0 0.0
    %357 = vmatpush1.msra.mxu0 0.0
    %358 = vmatprep.subr.mxu0 0.0
    %359 = vmatpush1.msra.mxu0 0.0
    %360 = vmatprep.subr.mxu0 0.0
    %361 = vmatpush1.msra.mxu0 0.0
    %362 = vmatprep.subr.mxu0 0.0
    %363 = vmatpush1.msra.mxu0 0.0
    %364 = vmatprep.subr.mxu0 0.0
    %365 = vmatpush1.msra.mxu0 0.0
    %366 = vmatprep.subr.mxu0 0.0
    %367 = vmatpush1.msra.mxu0 0.0
    %368 = vmatprep.mubr.f32.mxu0 0.0
    %369 = vmatmul.mubr.f32.gmra.mrb[0].mxu0 %v302
    %v370 = vpop.f32.mrb[0].mxu0
    %v371 = vadd.f32 %v299, %v370
    %v372 = vpop.f32.mrb[0].mxu0
    %373 = vdwg.mxu0
    %v374 = vxor.u32 %v371, 2147483648
    %v375 = vmul.f32 %v374, 1.442695
    %v376 = vpow.pop %v375
    %v377 = vadd.f32 %v376, 1.0
    %v378 = vrcp.pop %v377
    %v379 = vmul.f32 1.0, %v378
    %v380 = vmax.f32 %v371, 0.0
    %382 = vrot.lane.b32.xlu0 %v380, 96
    %v383 = vpop.permute.xlu0 %382
    %v385 = vmul.f32 %v379, %v383
    %v386 = vsub.f32 1.0, %v379
    %v387 = vmul.f32 %v386, %v290
    %v388 = vadd.f32 %v385, %v387
    %v389 = vld [vmem:[#allocation2 + $0x60] sm:$0xff]
    %v390 = vld [vmem:[#allocation2 + $0x68] sm:$0xff]
    %v391 = vld [vmem:[#allocation2 + $0x70] sm:$0xff]
    %v392 = vld [vmem:[#allocation2 + $0x78] sm:$0xff]
    %v393 = vld [vmem:[%s2 + $0x2] sm:$0x1]
    %v394 = vlaneseq
    %v395 = vshrl.u32 %v394, 7
    %v396 = vsub.s32 0, %v395
    %v397 = vrot.slane %v393, %v396
    %v399 = vsel %vm300, %v388, 0
    %401 = vmatprep.subr.mxu0 0.0
    %402 = vmatpush1.msra.mxu0 %v389
    %403 = vmatprep.subr.mxu0 0.0
    %404 = vmatpush1.msra.mxu0 %v390
    %405 = vmatprep.subr.mxu0 0.0
    %406 = vmatpush1.msra.mxu0 %v391
    %407 = vmatprep.subr.mxu0 0.0
    %408 = vmatpush1.msra.mxu0 %v392
    %409 = vmatprep.subr.mxu0 0.0
    %410 = vmatpush1.msra.mxu0 0.0
    %411 = vmatprep.subr.mxu0 0.0
    %412 = vmatpush1.msra.mxu0 0.0
    %413 = vmatprep.subr.mxu0 0.0
    %414 = vmatpush1.msra.mxu0 0.0
    %415 = vmatprep.subr.mxu0 0.0
    %416 = vmatpush1.msra.mxu0 0.0
    %417 = vmatprep.subr.mxu0 0.0
    %418 = vmatpush1.msra.mxu0 0.0
    %419 = vmatprep.subr.mxu0 0.0
    %420 = vmatpush1.msra.mxu0 0.0
    %421 = vmatprep.subr.mxu0 0.0
    %422 = vmatpush1.msra.mxu0 0.0
    %423 = vmatprep.subr.mxu0 0.0
    %424 = vmatpush1.msra.mxu0 0.0
    %425 = vmatprep.subr.mxu0 0.0
    %426 = vmatpush1.msra.mxu0 0.0
    %427 = vmatprep.subr.mxu0 0.0
    %428 = vmatpush1.msra.mxu0 0.0
    %429 = vmatprep.subr.mxu0 0.0
    %430 = vmatpush1.msra.mxu0 0.0
    %431 = vmatprep.subr.mxu0 0.0
    %432 = vmatpush1.msra.mxu0 0.0
    %433 = vmatprep.subr.mxu0 0.0
    %434 = vmatpush1.msra.mxu0 0.0
    %435 = vmatprep.subr.mxu0 0.0
    %436 = vmatpush1.msra.mxu0 0.0
    %437 = vmatprep.subr.mxu0 0.0
    %438 = vmatpush1.msra.mxu0 0.0
    %439 = vmatprep.subr.mxu0 0.0
    %440 = vmatpush1.msra.mxu0 0.0
    %441 = vmatprep.subr.mxu0 0.0
    %442 = vmatpush1.msra.mxu0 0.0
    %443 = vmatprep.subr.mxu0 0.0
    %444 = vmatpush1.msra.mxu0 0.0
    %445 = vmatprep.subr.mxu0 0.0
    %446 = vmatpush1.msra.mxu0 0.0
    %447 = vmatprep.subr.mxu0 0.0
    %448 = vmatpush1.msra.mxu0 0.0
    %449 = vmatprep.subr.mxu0 0.0
    %450 = vmatpush1.msra.mxu0 0.0
    %451 = vmatprep.subr.mxu0 0.0
    %452 = vmatpush1.msra.mxu0 0.0
    %453 = vmatprep.subr.mxu0 0.0
    %454 = vmatpush1.msra.mxu0 0.0
    %455 = vmatprep.subr.mxu0 0.0
    %456 = vmatpush1.msra.mxu0 0.0
    %457 = vmatprep.subr.mxu0 0.0
    %458 = vmatpush1.msra.mxu0 0.0
    %459 = vmatprep.subr.mxu0 0.0
    %460 = vmatpush1.msra.mxu0 0.0
    %461 = vmatprep.subr.mxu0 0.0
    %462 = vmatpush1.msra.mxu0 0.0
    %463 = vmatprep.subr.mxu0 0.0
    %464 = vmatpush1.msra.mxu0 0.0
    %465 = vmatprep.mubr.f32.mxu0 0.0
    %466 = vmatmul.mubr.f32.gmra.mrb[0].mxu0 %v399
    %v467 = vpop.f32.mrb[0].mxu0
    %v468 = vadd.f32 %v397, %v467
    %v469 = vpop.f32.mrb[0].mxu0
    %470 = vdwg.mxu0
    %v471 = vxor.u32 %v468, 2147483648
    %v472 = vmul.f32 %v471, 1.442695
    %v473 = vpow.pop %v472
    %v474 = vadd.f32 %v473, 1.0
    %v475 = vrcp.pop %v474
    %v476 = vmul.f32 1.0, %v475
    %v477 = vmax.f32 %v468, 0.0
    %479 = vrot.lane.b32.xlu0 %v477, 96
    %v480 = vpop.permute.xlu0 %479
    %v482 = vmul.f32 %v476, %v480
    %v483 = vsub.f32 1.0, %v476
    %v484 = vmul.f32 %v483, %v388
    %v485 = vadd.f32 %v482, %v484
    %v486 = vld [vmem:[#allocation2 + $0x80] sm:$0xff]
    %v487 = vld [vmem:[#allocation2 + $0x88] sm:$0xff]
    %v488 = vld [vmem:[#allocation2 + $0x90] sm:$0xff]
    %v489 = vld [vmem:[#allocation2 + $0x98] sm:$0xff]
    %v490 = vld [vmem:[#allocation2 + $0xa0] sm:$0xff]
    %v491 = vld [vmem:[#allocation2 + $0xa8] sm:$0xff]
    %v492 = vld [vmem:[#allocation2 + $0xb0] sm:$0xff]
    %v493 = vld [vmem:[#allocation2 + $0xb8] sm:$0xff]
    %v494 = vld [vmem:[%s2 + $0x3] sm:$0x1]
    %v495 = vlaneseq
    %v496 = vshrl.u32 %v495, 7
    %v497 = vsub.s32 0, %v496
    %v498 = vrot.slane %v494, %v497
    %v500 = vsel %vm300, %v485, 0
    %502 = vmatprep.subr.mxu0 0.0
    %503 = vmatpush1.msra.mxu0 %v486
    %504 = vmatprep.subr.mxu0 0.0
    %505 = vmatpush1.msra.mxu0 %v487
    %506 = vmatprep.subr.mxu0 0.0
    %507 = vmatpush1.msra.mxu0 %v488
    %508 = vmatprep.subr.mxu0 0.0
    %509 = vmatpush1.msra.mxu0 %v489
    %510 = vmatprep.subr.mxu0 0.0
    %511 = vmatpush1.msra.mxu0 0.0
    %512 = vmatprep.subr.mxu0 0.0
    %513 = vmatpush1.msra.mxu0 0.0
    %514 = vmatprep.subr.mxu0 0.0
    %515 = vmatpush1.msra.mxu0 0.0
    %516 = vmatprep.subr.mxu0 0.0
    %517 = vmatpush1.msra.mxu0 0.0
    %518 = vmatprep.subr.mxu0 0.0
    %519 = vmatpush1.msra.mxu0 0.0
    %520 = vmatprep.subr.mxu0 0.0
    %521 = vmatpush1.msra.mxu0 0.0
    %522 = vmatprep.subr.mxu0 0.0
    %523 = vmatpush1.msra.mxu0 0.0
    %524 = vmatprep.subr.mxu0 0.0
    %525 = vmatpush1.msra.mxu0 0.0
    %526 = vmatprep.subr.mxu0 0.0
    %527 = vmatpush1.msra.mxu0 0.0
    %528 = vmatprep.subr.mxu0 0.0
    %529 = vmatpush1.msra.mxu0 0.0
    %530 = vmatprep.subr.mxu0 0.0
    %531 = vmatpush1.msra.mxu0 0.0
    %532 = vmatprep.subr.mxu0 0.0
    %533 = vmatpush1.msra.mxu0 0.0
    %534 = vmatprep.subr.mxu0 0.0
    %535 = vmatpush1.msra.mxu0 0.0
    %536 = vmatprep.subr.mxu0 0.0
    %537 = vmatpush1.msra.mxu0 0.0
    %538 = vmatprep.subr.mxu0 0.0
    %539 = vmatpush1.msra.mxu0 0.0
    %540 = vmatprep.subr.mxu0 0.0
    %541 = vmatpush1.msra.mxu0 0.0
    %542 = vmatprep.subr.mxu0 0.0
    %543 = vmatpush1.msra.mxu0 0.0
    %544 = vmatprep.subr.mxu0 0.0
    %545 = vmatpush1.msra.mxu0 0.0
    %546 = vmatprep.subr.mxu0 0.0
    %547 = vmatpush1.msra.mxu0 0.0
    %548 = vmatprep.subr.mxu0 0.0
    %549 = vmatpush1.msra.mxu0 0.0
    %550 = vmatprep.subr.mxu0 0.0
    %551 = vmatpush1.msra.mxu0 0.0
    %552 = vmatprep.subr.mxu0 0.0
    %553 = vmatpush1.msra.mxu0 0.0
    %554 = vmatprep.subr.mxu0 0.0
    %555 = vmatpush1.msra.mxu0 0.0
    %556 = vmatprep.subr.mxu0 0.0
    %557 = vmatpush1.msra.mxu0 0.0
    %558 = vmatprep.subr.mxu0 0.0
    %559 = vmatpush1.msra.mxu0 0.0
    %560 = vmatprep.subr.mxu0 0.0
    %561 = vmatpush1.msra.mxu0 0.0
    %562 = vmatprep.subr.mxu0 0.0
    %563 = vmatpush1.msra.mxu0 0.0
    %564 = vmatprep.subr.mxu0 0.0
    %565 = vmatpush1.msra.mxu0 0.0
    %566 = vmatprep.mubr.f32.mxu0 0.0
    %567 = vmatmul.mubr.f32.gmra.mrb[0].mxu0 %v500
    %v568 = vpop.f32.mrb[0].mxu0
    %v569 = vadd.f32 %v498, %v568
    %v570 = vpop.f32.mrb[0].mxu0
    %571 = vdwg.mxu0
    %v572 = vld [vmem:[#allocation2 + $0xc0] sm:$0xff]
    %v573 = vld [vmem:[#allocation2 + $0xc8] sm:$0xff]
    %v574 = vld [vmem:[#allocation2 + $0xd0] sm:$0xff]
    %v575 = vld [vmem:[#allocation2 + $0xd8] sm:$0xff]
    %v576 = vld [vmem:[#allocation2 + $0xe0] sm:$0xff]
    %v577 = vld [vmem:[#allocation2 + $0xe8] sm:$0xff]
    %v578 = vld [vmem:[#allocation2 + $0xf0] sm:$0xff]
    %v579 = vld [vmem:[#allocation2 + $0xf8] sm:$0xff]
    %v580 = vld [vmem:[%s2 + $0x4] sm:$0x1]
    %v582 = vsel %vm300, 0.0, 0
    %584 = vmatprep.subr.mxu0 0.0
    %585 = vmatpush1.msra.mxu0 %v490
    %586 = vmatprep.subr.mxu0 0.0
    %587 = vmatpush1.msra.mxu0 %v491
    %588 = vmatprep.subr.mxu0 0.0
    %589 = vmatpush1.msra.mxu0 %v492
    %590 = vmatprep.subr.mxu0 0.0
    %591 = vmatpush1.msra.mxu0 %v493
    %592 = vmatprep.subr.mxu0 0.0
    %593 = vmatpush1.msra.mxu0 0.0
    %594 = vmatprep.subr.mxu0 0.0
    %595 = vmatpush1.msra.mxu0 0.0
    %596 = vmatprep.subr.mxu0 0.0
    %597 = vmatpush1.msra.mxu0 0.0
    %598 = vmatprep.subr.mxu0 0.0
    %599 = vmatpush1.msra.mxu0 0.0
    %600 = vmatprep.subr.mxu0 0.0
    %601 = vmatpush1.msra.mxu0 0.0
    %602 = vmatprep.subr.mxu0 0.0
    %603 = vmatpush1.msra.mxu0 0.0
    %604 = vmatprep.subr.mxu0 0.0
    %605 = vmatpush1.msra.mxu0 0.0
    %606 = vmatprep.subr.mxu0 0.0
    %607 = vmatpush1.msra.mxu0 0.0
    %608 = vmatprep.subr.mxu0 0.0
    %609 = vmatpush1.msra.mxu0 0.0
    %610 = vmatprep.subr.mxu0 0.0
    %611 = vmatpush1.msra.mxu0 0.0
    %612 = vmatprep.subr.mxu0 0.0
    %613 = vmatpush1.msra.mxu0 0.0
    %614 = vmatprep.subr.mxu0 0.0
    %615 = vmatpush1.msra.mxu0 0.0
    %616 = vmatprep.subr.mxu0 0.0
    %617 = vmatpush1.msra.mxu0 0.0
    %618 = vmatprep.subr.mxu0 0.0
    %619 = vmatpush1.msra.mxu0 0.0
    %620 = vmatprep.subr.mxu0 0.0
    %621 = vmatpush1.msra.mxu0 0.0
    %622 = vmatprep.subr.mxu0 0.0
    %623 = vmatpush1.msra.mxu0 0.0
    %624 = vmatprep.subr.mxu0 0.0
    %625 = vmatpush1.msra.mxu0 0.0
    %626 = vmatprep.subr.mxu0 0.0
    %627 = vmatpush1.msra.mxu0 0.0
    %628 = vmatprep.subr.mxu0 0.0
    %629 = vmatpush1.msra.mxu0 0.0
    %630 = vmatprep.subr.mxu0 0.0
    %631 = vmatpush1.msra.mxu0 0.0
    %632 = vmatprep.subr.mxu0 0.0
    %633 = vmatpush1.msra.mxu0 0.0
    %634 = vmatprep.subr.mxu0 0.0
    %635 = vmatpush1.msra.mxu0 0.0
    %636 = vmatprep.subr.mxu0 0.0
    %637 = vmatpush1.msra.mxu0 0.0
    %638 = vmatprep.subr.mxu0 0.0
    %639 = vmatpush1.msra.mxu0 0.0
    %640 = vmatprep.subr.mxu0 0.0
    %641 = vmatpush1.msra.mxu0 0.0
    %642 = vmatprep.subr.mxu0 0.0
    %643 = vmatpush1.msra.mxu0 0.0
    %644 = vmatprep.subr.mxu0 0.0
    %645 = vmatpush1.msra.mxu0 0.0
    %646 = vmatprep.subr.mxu0 0.0
    %647 = vmatpush1.msra.mxu0 0.0
    %648 = vmatprep.mubr.f32.mxu0 0.0
    %649 = vmatmul.mubr.f32.gmra.mrb[0].mxu0 %v582
    %v650 = vpop.f32.mrb[0].mxu0
    %v651 = vadd.f32 0.0, %v650
    %v652 = vpop.f32.mrb[0].mxu0
    %653 = vdwg.mxu0
    %v654 = vadd.f32 %v569, %v651
    %v655 = vxor.u32 %v654, 2147483648
    %v656 = vmul.f32 %v655, 1.442695
    %v657 = vpow.pop %v656
    %v658 = vadd.f32 %v657, 1.0
    %v659 = vrcp.pop %v658
    %v660 = vmul.f32 1.0, %v659
    %v661 = vtanh.pop %v654
    %v662 = vmul.f32 %v660, 0.0
    %664 = vrot.lane.b32.xlu0 %v661, 32
    %v665 = vpop.permute.xlu0 %664
    %v667 = vmul.f32 %v660, %v665
    %669 = vrot.lane.b32.xlu0 %v667, 32
    %v670 = vpop.permute.xlu0 %669
    %v672 = vadd.f32 %v662, %v670
    %v673 = vtanh.pop %v672
    %675 = vrot.lane.b32.xlu0 %v673, 32
    %v676 = vpop.permute.xlu0 %675
    %v678 = vmul.f32 %v660, %v676
    %680 = vrot.lane.b32.xlu0 %v678, 64
    %v681 = vpop.permute.xlu0 %680
    %v682 = vsel %vm300, %v681, 0
    %684 = vmatprep.subr.mxu0 0.0
    %685 = vmatpush1.msra.mxu0 %v490
    %686 = vmatprep.subr.mxu0 0.0
    %687 = vmatpush1.msra.mxu0 %v491
    %688 = vmatprep.subr.mxu0 0.0
    %689 = vmatpush1.msra.mxu0 %v492
    %690 = vmatprep.subr.mxu0 0.0
    %691 = vmatpush1.msra.mxu0 %v493
    %692 = vmatprep.subr.mxu0 0.0
    %693 = vmatpush1.msra.mxu0 0.0
    %694 = vmatprep.subr.mxu0 0.0
    %695 = vmatpush1.msra.mxu0 0.0
    %696 = vmatprep.subr.mxu0 0.0
    %697 = vmatpush1.msra.mxu0 0.0
    %698 = vmatprep.subr.mxu0 0.0
    %699 = vmatpush1.msra.mxu0 0.0
    %700 = vmatprep.subr.mxu0 0.0
    %701 = vmatpush1.msra.mxu0 0.0
    %702 = vmatprep.subr.mxu0 0.0
    %703 = vmatpush1.msra.mxu0 0.0
    %704 = vmatprep.subr.mxu0 0.0
    %705 = vmatpush1.msra.mxu0 0.0
    %706 = vmatprep.subr.mxu0 0.0
    %707 = vmatpush1.msra.mxu0 0.0
    %708 = vmatprep.subr.mxu0 0.0
    %709 = vmatpush1.msra.mxu0 0.0
    %710 = vmatprep.subr.mxu0 0.0
    %711 = vmatpush1.msra.mxu0 0.0
    %712 = vmatprep.subr.mxu0 0.0
    %713 = vmatpush1.msra.mxu0 0.0
    %714 = vmatprep.subr.mxu0 0.0
    %715 = vmatpush1.msra.mxu0 0.0
    %716 = vmatprep.subr.mxu0 0.0
    %717 = vmatpush1.msra.mxu0 0.0
    %718 = vmatprep.subr.mxu0 0.0
    %719 = vmatpush1.msra.mxu0 0.0
    %720 = vmatprep.subr.mxu0 0.0
    %721 = vmatpush1.msra.mxu0 0.0
    %722 = vmatprep.subr.mxu0 0.0
    %723 = vmatpush1.msra.mxu0 0.0
    %724 = vmatprep.subr.mxu0 0.0
    %725 = vmatpush1.msra.mxu0 0.0
    %726 = vmatprep.subr.mxu0 0.0
    %727 = vmatpush1.msra.mxu0 0.0
    %728 = vmatprep.subr.mxu0 0.0
    %729 = vmatpush1.msra.mxu0 0.0
    %730 = vmatprep.subr.mxu0 0.0
    %731 = vmatpush1.msra.mxu0 0.0
    %732 = vmatprep.subr.mxu0 0.0
    %733 = vmatpush1.msra.mxu0 0.0
    %734 = vmatprep.subr.mxu0 0.0
    %735 = vmatpush1.msra.mxu0 0.0
    %736 = vmatprep.subr.mxu0 0.0
    %737 = vmatpush1.msra.mxu0 0.0
    %738 = vmatprep.subr.mxu0 0.0
    %739 = vmatpush1.msra.mxu0 0.0
    %740 = vmatprep.subr.mxu0 0.0
    %741 = vmatpush1.msra.mxu0 0.0
    %742 = vmatprep.subr.mxu0 0.0
    %743 = vmatpush1.msra.mxu0 0.0
    %744 = vmatprep.subr.mxu0 0.0
    %745 = vmatpush1.msra.mxu0 0.0
    %746 = vmatprep.subr.mxu0 0.0
    %747 = vmatpush1.msra.mxu0 0.0
    %748 = vmatprep.mubr.f32.mxu0 0.0
    %749 = vmatmul.mubr.f32.gmra.mrb[0].mxu0 %v682
    %v750 = vpop.f32.mrb[0].mxu0
    %v751 = vadd.f32 0.0, %v750
    %v752 = vpop.f32.mrb[0].mxu0
    %753 = vdwg.mxu0
    %v755 = vrot.slane %v751, 7
    %v757 = vadd.f32 %v569, %v755
    %v758 = vxor.u32 %v757, 2147483648
    %v759 = vmul.f32 %v758, 1.442695
    %v760 = vpow.pop %v759
    %v761 = vadd.f32 %v760, 1.0
    %v762 = vrcp.pop %v761
    %v763 = vmul.f32 1.0, %v762
    %v764 = vtanh.pop %v757
    %v766 = vrot.slane %v672, 7
    %v768 = vmul.f32 %v763, %v766
    %770 = vrot.lane.b32.xlu0 %v764, 32
    %v771 = vpop.permute.xlu0 %770
    %v773 = vmul.f32 %v763, %v771
    %775 = vrot.lane.b32.xlu0 %v773, 32
    %v776 = vpop.permute.xlu0 %775
    %v778 = vadd.f32 %v768, %v776
    %v779 = vtanh.pop %v778
    %781 = vrot.lane.b32.xlu0 %v779, 32
    %v782 = vpop.permute.xlu0 %781
    %v784 = vmul.f32 %v763, %v782
    %v786 = vsel %vm300, %v681, 0.0
    %v788 = vsel %vm55, %v786, 0
    %790 = vmatprep.subr.mxu0 0.0
    %791 = vmatpush1.msra.mxu0 %v572
    %792 = vmatprep.subr.mxu0 0.0
    %793 = vmatpush1.msra.mxu0 %v573
    %794 = vmatprep.subr.mxu0 0.0
    %795 = vmatpush1.msra.mxu0 %v574
    %796 = vmatprep.subr.mxu0 0.0
    %797 = vmatpush1.msra.mxu0 %v575
    %798 = vmatprep.subr.mxu0 0.0
    %799 = vmatpush1.msra.mxu0 %v576
    %800 = vmatprep.subr.mxu0 0.0
    %801 = vmatpush1.msra.mxu0 %v577
    %802 = vmatprep.subr.mxu0 0.0
    %803 = vmatpush1.msra.mxu0 %v578
    %804 = vmatprep.subr.mxu0 0.0
    %805 = vmatpush1.msra.mxu0 %v579
    %806 = vmatprep.subr.mxu0 0.0
    %807 = vmatpush1.msra.mxu0 0.0
    %808 = vmatprep.subr.mxu0 0.0
    %809 = vmatpush1.msra.mxu0 0.0
    %810 = vmatprep.subr.mxu0 0.0
    %811 = vmatpush1.msra.mxu0 0.0
    %812 = vmatprep.subr.mxu0 0.0
    %813 = vmatpush1.msra.mxu0 0.0
    %814 = vmatprep.subr.mxu0 0.0
    %815 = vmatpush1.msra.mxu0 0.0
    %816 = vmatprep.subr.mxu0 0.0
    %817 = vmatpush1.msra.mxu0 0.0
    %818 = vmatprep.subr.mxu0 0.0
    %819 = vmatpush1.msra.mxu0 0.0
    %820 = vmatprep.subr.mxu0 0.0
    %821 = vmatpush1.msra.mxu0 0.0
    %822 = vmatprep.subr.mxu0 0.0
    %823 = vmatpush1.msra.mxu0 0.0
    %824 = vmatprep.subr.mxu0 0.0
    %825 = vmatpush1.msra.mxu0 0.0
    %826 = vmatprep.subr.mxu0 0.0
    %827 = vmatpush1.msra.mxu0 0.0
    %828 = vmatprep.subr.mxu0 0.0
    %829 = vmatpush1.msra.mxu0 0.0
    %830 = vmatprep.subr.mxu0 0.0
    %831 = vmatpush1.msra.mxu0 0.0
    %832 = vmatprep.subr.mxu0 0.0
    %833 = vmatpush1.msra.mxu0 0.0
    %834 = vmatprep.subr.mxu0 0.0
    %835 = vmatpush1.msra.mxu0 0.0
    %836 = vmatprep.subr.mxu0 0.0
    %837 = vmatpush1.msra.mxu0 0.0
    %838 = vmatprep.subr.mxu0 0.0
    %839 = vmatpush1.msra.mxu0 0.0
    %840 = vmatprep.subr.mxu0 0.0
    %841 = vmatpush1.msra.mxu0 0.0
    %842 = vmatprep.subr.mxu0 0.0
    %843 = vmatpush1.msra.mxu0 0.0
    %844 = vmatprep.subr.mxu0 0.0
    %845 = vmatpush1.msra.mxu0 0.0
    %846 = vmatprep.subr.mxu0 0.0
    %847 = vmatpush1.msra.mxu0 0.0
    %848 = vmatprep.subr.mxu0 0.0
    %849 = vmatpush1.msra.mxu0 0.0
    %850 = vmatprep.subr.mxu0 0.0
    %851 = vmatpush1.msra.mxu0 0.0
    %852 = vmatprep.subr.mxu0 0.0
    %853 = vmatpush1.msra.mxu0 0.0
    %854 = vmatprep.mubr.f32.mxu0 0.0
    %855 = vmatmul.mubr.f32.gmra.mrb[0].mxu0 %v788
    %v856 = vpop.f32.mrb[0].mxu0
    %v857 = vadd.f32 %v580, %v856
    %v858 = vpop.f32.mrb[0].mxu0
    %859 = vdwg.mxu0
    %v860 = vxor.u32 %v857, 2147483648
    %v861 = vmul.f32 %v860, 1.442695
    %v862 = vpow.pop %v861
    %v863 = vadd.f32 %v862, 1.0
    %v864 = vrcp.pop %v863
    %v865 = vmul.f32 1.0, %v864
    %v866 = vtanh.pop %v857
    %v867 = vmul.f32 %v865, 0.0
    %869 = vrot.lane.b32.xlu0 %v866, 32
    %v870 = vpop.permute.xlu0 %869
    %v872 = vmul.f32 %v865, %v870
    %874 = vrot.lane.b32.xlu0 %v872, 32
    %v875 = vpop.permute.xlu0 %874
    %v877 = vadd.f32 %v867, %v875
    %v878 = vtanh.pop %v877
    %880 = vrot.lane.b32.xlu0 %v878, 32
    %v881 = vpop.permute.xlu0 %880
    %v883 = vmul.f32 %v865, %v881
    %v885 = vrot.slane %v784, 1
    %886 = vrot.lane.b32.xlu0 %v885, 64
    %v887 = vpop.permute.xlu0 %886
    %v888 = vsel %vm300, %v887, 0
    %890 = vmatprep.subr.mxu0 0.0
    %891 = vmatpush1.msra.mxu0 %v490
    %892 = vmatprep.subr.mxu0 0.0
    %893 = vmatpush1.msra.mxu0 %v491
    %894 = vmatprep.subr.mxu0 0.0
    %895 = vmatpush1.msra.mxu0 %v492
    %896 = vmatprep.subr.mxu0 0.0
    %897 = vmatpush1.msra.mxu0 %v493
    %898 = vmatprep.subr.mxu0 0.0
    %899 = vmatpush1.msra.mxu0 0.0
    %900 = vmatprep.subr.mxu0 0.0
    %901 = vmatpush1.msra.mxu0 0.0
    %902 = vmatprep.subr.mxu0 0.0
    %903 = vmatpush1.msra.mxu0 0.0
    %904 = vmatprep.subr.mxu0 0.0
    %905 = vmatpush1.msra.mxu0 0.0
    %906 = vmatprep.subr.mxu0 0.0
    %907 = vmatpush1.msra.mxu0 0.0
    %908 = vmatprep.subr.mxu0 0.0
    %909 = vmatpush1.msra.mxu0 0.0
    %910 = vmatprep.subr.mxu0 0.0
    %911 = vmatpush1.msra.mxu0 0.0
    %912 = vmatprep.subr.mxu0 0.0
    %913 = vmatpush1.msra.mxu0 0.0
    %914 = vmatprep.subr.mxu0 0.0
    %915 = vmatpush1.msra.mxu0 0.0
    %916 = vmatprep.subr.mxu0 0.0
    %917 = vmatpush1.msra.mxu0 0.0
    %918 = vmatprep.subr.mxu0 0.0
    %919 = vmatpush1.msra.mxu0 0.0
    %920 = vmatprep.subr.mxu0 0.0
    %921 = vmatpush1.msra.mxu0 0.0
    %922 = vmatprep.subr.mxu0 0.0
    %923 = vmatpush1.msra.mxu0 0.0
    %924 = vmatprep.subr.mxu0 0.0
    %925 = vmatpush1.msra.mxu0 0.0
    %926 = vmatprep.subr.mxu0 0.0
    %927 = vmatpush1.msra.mxu0 0.0
    %928 = vmatprep.subr.mxu0 0.0
    %929 = vmatpush1.msra.mxu0 0.0
    %930 = vmatprep.subr.mxu0 0.0
    %931 = vmatpush1.msra.mxu0 0.0
    %932 = vmatprep.subr.mxu0 0.0
    %933 = vmatpush1.msra.mxu0 0.0
    %934 = vmatprep.subr.mxu0 0.0
    %935 = vmatpush1.msra.mxu0 0.0
    %936 = vmatprep.subr.mxu0 0.0
    %937 = vmatpush1.msra.mxu0 0.0
    %938 = vmatprep.subr.mxu0 0.0
    %939 = vmatpush1.msra.mxu0 0.0
    %940 = vmatprep.subr.mxu0 0.0
    %941 = vmatpush1.msra.mxu0 0.0
    %942 = vmatprep.subr.mxu0 0.0
    %943 = vmatpush1.msra.mxu0 0.0
    %944 = vmatprep.subr.mxu0 0.0
    %945 = vmatpush1.msra.mxu0 0.0
    %946 = vmatprep.subr.mxu0 0.0
    %947 = vmatpush1.msra.mxu0 0.0
    %948 = vmatprep.subr.mxu0 0.0
    %949 = vmatpush1.msra.mxu0 0.0
    %950 = vmatprep.subr.mxu0 0.0
    %951 = vmatpush1.msra.mxu0 0.0
    %952 = vmatprep.subr.mxu0 0.0
    %953 = vmatpush1.msra.mxu0 0.0
    %954 = vmatprep.mubr.f32.mxu0 0.0
    %955 = vmatmul.mubr.f32.gmra.mrb[0].mxu0 %v888
    %v956 = vpop.f32.mrb[0].mxu0
    %v957 = vadd.f32 0.0, %v956
    %v958 = vpop.f32.mrb[0].mxu0
    %959 = vdwg.mxu0
    %v961 = vrot.slane %v957, 6
    %v963 = vadd.f32 %v569, %v961
    %v964 = vxor.u32 %v963, 2147483648
    %v965 = vmul.f32 %v964, 1.442695
    %v966 = vpow.pop %v965
    %v967 = vadd.f32 %v966, 1.0
    %v968 = vrcp.pop %v967
    %v969 = vmul.f32 1.0, %v968
    %v970 = vtanh.pop %v963
    %v972 = vrot.slane %v778, 7
    %v974 = vmul.f32 %v969, %v972
    %976 = vrot.lane.b32.xlu0 %v970, 32
    %v977 = vpop.permute.xlu0 %976
    %v979 = vmul.f32 %v969, %v977
    %981 = vrot.lane.b32.xlu0 %v979, 32
    %v982 = vpop.permute.xlu0 %981
    %v984 = vadd.f32 %v974, %v982
    %v985 = vtanh.pop %v984
    %987 = vrot.lane.b32.xlu0 %v985, 32
    %v988 = vpop.permute.xlu0 %987
    %v990 = vmul.f32 %v969, %v988
    %991 = vrot.lane.b32.xlu0 %v784, 64
    %v992 = vpop.permute.xlu0 %991
    %v995 = vrot.slane %v883, 7
    %996 = vrot.lane.b32.xlu0 %v995, 96
    %v997 = vpop.permute.xlu0 %996
    %v999 = vsel %vm300, %v992, %v997
    %v1001 = vrot.slane %v999, 1
    %v1002 = vsel %vm55, %v1001, 0
    %1004 = vmatprep.subr.mxu0 0.0
    %1005 = vmatpush1.msra.mxu0 %v572
    %1006 = vmatprep.subr.mxu0 0.0
    %1007 = vmatpush1.msra.mxu0 %v573
    %1008 = vmatprep.subr.mxu0 0.0
    %1009 = vmatpush1.msra.mxu0 %v574
    %1010 = vmatprep.subr.mxu0 0.0
    %1011 = vmatpush1.msra.mxu0 %v575
    %1012 = vmatprep.subr.mxu0 0.0
    %1013 = vmatpush1.msra.mxu0 %v576
    %1014 = vmatprep.subr.mxu0 0.0
    %1015 = vmatpush1.msra.mxu0 %v577
    %1016 = vmatprep.subr.mxu0 0.0
    %1017 = vmatpush1.msra.mxu0 %v578
    %1018 = vmatprep.subr.mxu0 0.0
    %1019 = vmatpush1.msra.mxu0 %v579
    %1020 = vmatprep.subr.mxu0 0.0
    %1021 = vmatpush1.msra.mxu0 0.0
    %1022 = vmatprep.subr.mxu0 0.0
    %1023 = vmatpush1.msra.mxu0 0.0
    %1024 = vmatprep.subr.mxu0 0.0
    %1025 = vmatpush1.msra.mxu0 0.0
    %1026 = vmatprep.subr.mxu0 0.0
    %1027 = vmatpush1.msra.mxu0 0.0
    %1028 = vmatprep.subr.mxu0 0.0
    %1029 = vmatpush1.msra.mxu0 0.0
    %1030 = vmatprep.subr.mxu0 0.0
    %1031 = vmatpush1.msra.mxu0 0.0
    %1032 = vmatprep.subr.mxu0 0.0
    %1033 = vmatpush1.msra.mxu0 0.0
    %1034 = vmatprep.subr.mxu0 0.0
    %1035 = vmatpush1.msra.mxu0 0.0
    %1036 = vmatprep.subr.mxu0 0.0
    %1037 = vmatpush1.msra.mxu0 0.0
    %1038 = vmatprep.subr.mxu0 0.0
    %1039 = vmatpush1.msra.mxu0 0.0
    %1040 = vmatprep.subr.mxu0 0.0
    %1041 = vmatpush1.msra.mxu0 0.0
    %1042 = vmatprep.subr.mxu0 0.0
    %1043 = vmatpush1.msra.mxu0 0.0
    %1044 = vmatprep.subr.mxu0 0.0
    %1045 = vmatpush1.msra.mxu0 0.0
    %1046 = vmatprep.subr.mxu0 0.0
    %1047 = vmatpush1.msra.mxu0 0.0
    %1048 = vmatprep.subr.mxu0 0.0
    %1049 = vmatpush1.msra.mxu0 0.0
    %1050 = vmatprep.subr.mxu0 0.0
    %1051 = vmatpush1.msra.mxu0 0.0
    %1052 = vmatprep.subr.mxu0 0.0
    %1053 = vmatpush1.msra.mxu0 0.0
    %1054 = vmatprep.subr.mxu0 0.0
    %1055 = vmatpush1.msra.mxu0 0.0
    %1056 = vmatprep.subr.mxu0 0.0
    %1057 = vmatpush1.msra.mxu0 0.0
    %1058 = vmatprep.subr.mxu0 0.0
    %1059 = vmatpush1.msra.mxu0 0.0
    %1060 = vmatprep.subr.mxu0 0.0
    %1061 = vmatpush1.msra.mxu0 0.0
    %1062 = vmatprep.subr.mxu0 0.0
    %1063 = vmatpush1.msra.mxu0 0.0
    %1064 = vmatprep.subr.mxu0 0.0
    %1065 = vmatpush1.msra.mxu0 0.0
    %1066 = vmatprep.subr.mxu0 0.0
    %1067 = vmatpush1.msra.mxu0 0.0
    %1068 = vmatprep.mubr.f32.mxu0 0.0
    %1069 = vmatmul.mubr.f32.gmra.mrb[0].mxu0 %v1002
    %v1070 = vpop.f32.mrb[0].mxu0
    %v1071 = vadd.f32 %v580, %v1070
    %v1072 = vpop.f32.mrb[0].mxu0
    %1073 = vdwg.mxu0
    %v1074 = vxor.u32 %v1071, 2147483648
    %v1075 = vmul.f32 %v1074, 1.442695
    %v1076 = vpow.pop %v1075
    %v1077 = vadd.f32 %v1076, 1.0
    %v1078 = vrcp.pop %v1077
    %v1079 = vmul.f32 1.0, %v1078
    %v1080 = vtanh.pop %v1071
    %v1081 = vmul.f32 %v1079, %v877
    %1083 = vrot.lane.b32.xlu0 %v1080, 32
    %v1084 = vpop.permute.xlu0 %1083
    %v1086 = vmul.f32 %v1079, %v1084
    %1088 = vrot.lane.b32.xlu0 %v1086, 32
    %v1089 = vpop.permute.xlu0 %1088
    %v1091 = vadd.f32 %v1081, %v1089
    %v1092 = vtanh.pop %v1091
    %1094 = vrot.lane.b32.xlu0 %v1092, 32
    %v1095 = vpop.permute.xlu0 %1094
    %v1097 = vmul.f32 %v1079, %v1095
    %v1099 = vrot.slane %v990, 2
    %1100 = vrot.lane.b32.xlu0 %v1099, 64
    %v1101 = vpop.permute.xlu0 %1100
    %v1102 = vsel %vm300, %v1101, 0
    %1104 = vmatprep.subr.mxu0 0.0
    %1105 = vmatpush1.msra.mxu0 %v490
    %1106 = vmatprep.subr.mxu0 0.0
    %1107 = vmatpush1.msra.mxu0 %v491
    %1108 = vmatprep.subr.mxu0 0.0
    %1109 = vmatpush1.msra.mxu0 %v492
    %1110 = vmatprep.subr.mxu0 0.0
    %1111 = vmatpush1.msra.mxu0 %v493
    %1112 = vmatprep.subr.mxu0 0.0
    %1113 = vmatpush1.msra.mxu0 0.0
    %1114 = vmatprep.subr.mxu0 0.0
    %1115 = vmatpush1.msra.mxu0 0.0
    %1116 = vmatprep.subr.mxu0 0.0
    %1117 = vmatpush1.msra.mxu0 0.0
    %1118 = vmatprep.subr.mxu0 0.0
    %1119 = vmatpush1.msra.mxu0 0.0
    %1120 = vmatprep.subr.mxu0 0.0
    %1121 = vmatpush1.msra.mxu0 0.0
    %1122 = vmatprep.subr.mxu0 0.0
    %1123 = vmatpush1.msra.mxu0 0.0
    %1124 = vmatprep.subr.mxu0 0.0
    %1125 = vmatpush1.msra.mxu0 0.0
    %1126 = vmatprep.subr.mxu0 0.0
    %1127 = vmatpush1.msra.mxu0 0.0
    %1128 = vmatprep.subr.mxu0 0.0
    %1129 = vmatpush1.msra.mxu0 0.0
    %1130 = vmatprep.subr.mxu0 0.0
    %1131 = vmatpush1.msra.mxu0 0.0
    %1132 = vmatprep.subr.mxu0 0.0
    %1133 = vmatpush1.msra.mxu0 0.0
    %1134 = vmatprep.subr.mxu0 0.0
    %1135 = vmatpush1.msra.mxu0 0.0
    %1136 = vmatprep.subr.mxu0 0.0
    %1137 = vmatpush1.msra.mxu0 0.0
    %1138 = vmatprep.subr.mxu0 0.0
    %1139 = vmatpush1.msra.mxu0 0.0
    %1140 = vmatprep.subr.mxu0 0.0
    %1141 = vmatpush1.msra.mxu0 0.0
    %1142 = vmatprep.subr.mxu0 0.0
    %1143 = vmatpush1.msra.mxu0 0.0
    %1144 = vmatprep.subr.mxu0 0.0
    %1145 = vmatpush1.msra.mxu0 0.0
    %1146 = vmatprep.subr.mxu0 0.0
    %1147 = vmatpush1.msra.mxu0 0.0
    %1148 = vmatprep.subr.mxu0 0.0
    %1149 = vmatpush1.msra.mxu0 0.0
    %1150 = vmatprep.subr.mxu0 0.0
    %1151 = vmatpush1.msra.mxu0 0.0
    %1152 = vmatprep.subr.mxu0 0.0
    %1153 = vmatpush1.msra.mxu0 0.0
    %1154 = vmatprep.subr.mxu0 0.0
    %1155 = vmatpush1.msra.mxu0 0.0
    %1156 = vmatprep.subr.mxu0 0.0
    %1157 = vmatpush1.msra.mxu0 0.0
    %1158 = vmatprep.subr.mxu0 0.0
    %1159 = vmatpush1.msra.mxu0 0.0
    %1160 = vmatprep.subr.mxu0 0.0
    %1161 = vmatpush1.msra.mxu0 0.0
    %1162 = vmatprep.subr.mxu0 0.0
    %1163 = vmatpush1.msra.mxu0 0.0
    %1164 = vmatprep.subr.mxu0 0.0
    %1165 = vmatpush1.msra.mxu0 0.0
    %1166 = vmatprep.subr.mxu0 0.0
    %1167 = vmatpush1.msra.mxu0 0.0
    %1168 = vmatprep.mubr.f32.mxu0 0.0
    %1169 = vmatmul.mubr.f32.gmra.mrb[0].mxu0 %v1102
    %v1170 = vpop.f32.mrb[0].mxu0
    %v1171 = vadd.f32 0.0, %v1170
    %v1172 = vpop.f32.mrb[0].mxu0
    %1173 = vdwg.mxu0
    %v1175 = vrot.slane %v1171, 5
    %v1177 = vadd.f32 %v569, %v1175
    %v1178 = vxor.u32 %v1177, 2147483648
    %v1179 = vmul.f32 %v1178, 1.442695
    %v1180 = vpow.pop %v1179
    %v1181 = vadd.f32 %v1180, 1.0
    %v1182 = vrcp.pop %v1181
    %v1183 = vmul.f32 1.0, %v1182
    %v1184 = vtanh.pop %v1177
    %v1186 = vrot.slane %v984, 7
    %v1188 = vmul.f32 %v1183, %v1186
    %1190 = vrot.lane.b32.xlu0 %v1184, 32
    %v1191 = vpop.permute.xlu0 %1190
    %v1193 = vmul.f32 %v1183, %v1191
    %1195 = vrot.lane.b32.xlu0 %v1193, 32
    %v1196 = vpop.permute.xlu0 %1195
    %v1198 = vadd.f32 %v1188, %v1196
    %v1199 = vtanh.pop %v1198
    %1201 = vrot.lane.b32.xlu0 %v1199, 32
    %v1202 = vpop.permute.xlu0 %1201
    %v1204 = vmul.f32 %v1183, %v1202
    %1205 = vrot.lane.b32.xlu0 %v990, 64
    %v1206 = vpop.permute.xlu0 %1205
    %v1209 = vrot.slane %v1097, 6
    %1210 = vrot.lane.b32.xlu0 %v1209, 96
    %v1211 = vpop.permute.xlu0 %1210
    %v1213 = vsel %vm300, %v1206, %v1211
    %v1215 = vrot.slane %v1213, 2
    %v1216 = vsel %vm55, %v1215, 0
    %1218 = vmatprep.subr.mxu0 0.0
    %1219 = vmatpush1.msra.mxu0 %v572
    %1220 = vmatprep.subr.mxu0 0.0
    %1221 = vmatpush1.msra.mxu0 %v573
    %1222 = vmatprep.subr.mxu0 0.0
    %1223 = vmatpush1.msra.mxu0 %v574
    %1224 = vmatprep.subr.mxu0 0.0
    %1225 = vmatpush1.msra.mxu0 %v575
    %1226 = vmatprep.subr.mxu0 0.0
    %1227 = vmatpush1.msra.mxu0 %v576
    %1228 = vmatprep.subr.mxu0 0.0
    %1229 = vmatpush1.msra.mxu0 %v577
    %1230 = vmatprep.subr.mxu0 0.0
    %1231 = vmatpush1.msra.mxu0 %v578
    %1232 = vmatprep.subr.mxu0 0.0
    %1233 = vmatpush1.msra.mxu0 %v579
    %1234 = vmatprep.subr.mxu0 0.0
    %1235 = vmatpush1.msra.mxu0 0.0
    %1236 = vmatprep.subr.mxu0 0.0
    %1237 = vmatpush1.msra.mxu0 0.0
    %1238 = vmatprep.subr.mxu0 0.0
    %1239 = vmatpush1.msra.mxu0 0.0
    %1240 = vmatprep.subr.mxu0 0.0
    %1241 = vmatpush1.msra.mxu0 0.0
    %1242 = vmatprep.subr.mxu0 0.0
    %1243 = vmatpush1.msra.mxu0 0.0
    %1244 = vmatprep.subr.mxu0 0.0
    %1245 = vmatpush1.msra.mxu0 0.0
    %1246 = vmatprep.subr.mxu0 0.0
    %1247 = vmatpush1.msra.mxu0 0.0
    %1248 = vmatprep.subr.mxu0 0.0
    %1249 = vmatpush1.msra.mxu0 0.0
    %1250 = vmatprep.subr.mxu0 0.0
    %1251 = vmatpush1.msra.mxu0 0.0
    %1252 = vmatprep.subr.mxu0 0.0
    %1253 = vmatpush1.msra.mxu0 0.0
    %1254 = vmatprep.subr.mxu0 0.0
    %1255 = vmatpush1.msra.mxu0 0.0
    %1256 = vmatprep.subr.mxu0 0.0
    %1257 = vmatpush1.msra.mxu0 0.0
    %1258 = vmatprep.subr.mxu0 0.0
    %1259 = vmatpush1.msra.mxu0 0.0
    %1260 = vmatprep.subr.mxu0 0.0
    %1261 = vmatpush1.msra.mxu0 0.0
    %1262 = vmatprep.subr.mxu0 0.0
    %1263 = vmatpush1.msra.mxu0 0.0
    %1264 = vmatprep.subr.mxu0 0.0
    %1265 = vmatpush1.msra.mxu0 0.0
    %1266 = vmatprep.subr.mxu0 0.0
    %1267 = vmatpush1.msra.mxu0 0.0
    %1268 = vmatprep.subr.mxu0 0.0
    %1269 = vmatpush1.msra.mxu0 0.0
    %1270 = vmatprep.subr.mxu0 0.0
    %1271 = vmatpush1.msra.mxu0 0.0
    %1272 = vmatprep.subr.mxu0 0.0
    %1273 = vmatpush1.msra.mxu0 0.0
    %1274 = vmatprep.subr.mxu0 0.0
    %1275 = vmatpush1.msra.mxu0 0.0
    %1276 = vmatprep.subr.mxu0 0.0
    %1277 = vmatpush1.msra.mxu0 0.0
    %1278 = vmatprep.subr.mxu0 0.0
    %1279 = vmatpush1.msra.mxu0 0.0
    %1280 = vmatprep.subr.mxu0 0.0
    %1281 = vmatpush1.msra.mxu0 0.0
    %1282 = vmatprep.mubr.f32.mxu0 0.0
    %1283 = vmatmul.mubr.f32.gmra.mrb[0].mxu0 %v1216
    %v1284 = vpop.f32.mrb[0].mxu0
    %v1285 = vadd.f32 %v580, %v1284
    %v1286 = vpop.f32.mrb[0].mxu0
    %1287 = vdwg.mxu0
    %v1288 = vxor.u32 %v1285, 2147483648
    %v1289 = vmul.f32 %v1288, 1.442695
    %v1290 = vpow.pop %v1289
    %v1291 = vadd.f32 %v1290, 1.0
    %v1292 = vrcp.pop %v1291
    %v1293 = vmul.f32 1.0, %v1292
    %v1294 = vtanh.pop %v1285
    %v1295 = vmul.f32 %v1293, %v1091
    %1297 = vrot.lane.b32.xlu0 %v1294, 32
    %v1298 = vpop.permute.xlu0 %1297
    %v1300 = vmul.f32 %v1293, %v1298
    %1302 = vrot.lane.b32.xlu0 %v1300, 32
    %v1303 = vpop.permute.xlu0 %1302
    %v1305 = vadd.f32 %v1295, %v1303
    %v1306 = vtanh.pop %v1305
    %1308 = vrot.lane.b32.xlu0 %v1306, 32
    %v1309 = vpop.permute.xlu0 %1308
    %v1311 = vmul.f32 %v1293, %v1309
    %v1313 = vrot.slane %v1204, 3
    %1314 = vrot.lane.b32.xlu0 %v1313, 64
    %v1315 = vpop.permute.xlu0 %1314
    %v1316 = vsel %vm300, %v1315, 0
    %1318 = vmatprep.subr.mxu0 0.0
    %1319 = vmatpush1.msra.mxu0 %v490
    %1320 = vmatprep.subr.mxu0 0.0
    %1321 = vmatpush1.msra.mxu0 %v491
    %1322 = vmatprep.subr.mxu0 0.0
    %1323 = vmatpush1.msra.mxu0 %v492
    %1324 = vmatprep.subr.mxu0 0.0
    %1325 = vmatpush1.msra.mxu0 %v493
    %1326 = vmatprep.subr.mxu0 0.0
    %1327 = vmatpush1.msra.mxu0 0.0
    %1328 = vmatprep.subr.mxu0 0.0
    %1329 = vmatpush1.msra.mxu0 0.0
    %1330 = vmatprep.subr.mxu0 0.0
    %1331 = vmatpush1.msra.mxu0 0.0
    %1332 = vmatprep.subr.mxu0 0.0
    %1333 = vmatpush1.msra.mxu0 0.0
    %1334 = vmatprep.subr.mxu0 0.0
    %1335 = vmatpush1.msra.mxu0 0.0
    %1336 = vmatprep.subr.mxu0 0.0
    %1337 = vmatpush1.msra.mxu0 0.0
    %1338 = vmatprep.subr.mxu0 0.0
    %1339 = vmatpush1.msra.mxu0 0.0
    %1340 = vmatprep.subr.mxu0 0.0
    %1341 = vmatpush1.msra.mxu0 0.0
    %1342 = vmatprep.subr.mxu0 0.0
    %1343 = vmatpush1.msra.mxu0 0.0
    %1344 = vmatprep.subr.mxu0 0.0
    %1345 = vmatpush1.msra.mxu0 0.0
    %1346 = vmatprep.subr.mxu0 0.0
    %1347 = vmatpush1.msra.mxu0 0.0
    %1348 = vmatprep.subr.mxu0 0.0
    %1349 = vmatpush1.msra.mxu0 0.0
    %1350 = vmatprep.subr.mxu0 0.0
    %1351 = vmatpush1.msra.mxu0 0.0
    %1352 = vmatprep.subr.mxu0 0.0
    %1353 = vmatpush1.msra.mxu0 0.0
    %1354 = vmatprep.subr.mxu0 0.0
    %1355 = vmatpush1.msra.mxu0 0.0
    %1356 = vmatprep.subr.mxu0 0.0
    %1357 = vmatpush1.msra.mxu0 0.0
    %1358 = vmatprep.subr.mxu0 0.0
    %1359 = vmatpush1.msra.mxu0 0.0
    %1360 = vmatprep.subr.mxu0 0.0
    %1361 = vmatpush1.msra.mxu0 0.0
    %1362 = vmatprep.subr.mxu0 0.0
    %1363 = vmatpush1.msra.mxu0 0.0
    %1364 = vmatprep.subr.mxu0 0.0
    %1365 = vmatpush1.msra.mxu0 0.0
    %1366 = vmatprep.subr.mxu0 0.0
    %1367 = vmatpush1.msra.mxu0 0.0
    %1368 = vmatprep.subr.mxu0 0.0
    %1369 = vmatpush1.msra.mxu0 0.0
    %1370 = vmatprep.subr.mxu0 0.0
    %1371 = vmatpush1.msra.mxu0 0.0
    %1372 = vmatprep.subr.mxu0 0.0
    %1373 = vmatpush1.msra.mxu0 0.0
    %1374 = vmatprep.subr.mxu0 0.0
    %1375 = vmatpush1.msra.mxu0 0.0
    %1376 = vmatprep.subr.mxu0 0.0
    %1377 = vmatpush1.msra.mxu0 0.0
    %1378 = vmatprep.subr.mxu0 0.0
    %1379 = vmatpush1.msra.mxu0 0.0
    %1380 = vmatprep.subr.mxu0 0.0
    %1381 = vmatpush1.msra.mxu0 0.0
    %1382 = vmatprep.mubr.f32.mxu0 0.0
    %1383 = vmatmul.mubr.f32.gmra.mrb[0].mxu0 %v1316
    %v1384 = vpop.f32.mrb[0].mxu0
    %v1385 = vadd.f32 0.0, %v1384
    %v1386 = vpop.f32.mrb[0].mxu0
    %1387 = vdwg.mxu0
    %v1389 = vrot.slane %v1385, 4
    %v1391 = vadd.f32 %v569, %v1389
    %v1392 = vxor.u32 %v1391, 2147483648
    %v1393 = vmul.f32 %v1392, 1.442695
    %v1394 = vpow.pop %v1393
    %v1395 = vadd.f32 %v1394, 1.0
    %v1396 = vrcp.pop %v1395
    %v1397 = vmul.f32 1.0, %v1396
    %v1398 = vtanh.pop %v1391
    %v1400 = vrot.slane %v1198, 7
    %v1402 = vmul.f32 %v1397, %v1400
    %1404 = vrot.lane.b32.xlu0 %v1398, 32
    %v1405 = vpop.permute.xlu0 %1404
    %v1407 = vmul.f32 %v1397, %v1405
    %1409 = vrot.lane.b32.xlu0 %v1407, 32
    %v1410 = vpop.permute.xlu0 %1409
    %v1412 = vadd.f32 %v1402, %v1410
    %v1413 = vtanh.pop %v1412
    %1415 = vrot.lane.b32.xlu0 %v1413, 32
    %v1416 = vpop.permute.xlu0 %1415
    %v1418 = vmul.f32 %v1397, %v1416
    %1419 = vrot.lane.b32.xlu0 %v1204, 64
    %v1420 = vpop.permute.xlu0 %1419
    %v1423 = vrot.slane %v1311, 5
    %1424 = vrot.lane.b32.xlu0 %v1423, 96
    %v1425 = vpop.permute.xlu0 %1424
    %v1427 = vsel %vm300, %v1420, %v1425
    %v1429 = vrot.slane %v1427, 3
    %v1430 = vsel %vm55, %v1429, 0
    %1432 = vmatprep.subr.mxu0 0.0
    %1433 = vmatpush1.msra.mxu0 %v572
    %1434 = vmatprep.subr.mxu0 0.0
    %1435 = vmatpush1.msra.mxu0 %v573
    %1436 = vmatprep.subr.mxu0 0.0
    %1437 = vmatpush1.msra.mxu0 %v574
    %1438 = vmatprep.subr.mxu0 0.0
    %1439 = vmatpush1.msra.mxu0 %v575
    %1440 = vmatprep.subr.mxu0 0.0
    %1441 = vmatpush1.msra.mxu0 %v576
    %1442 = vmatprep.subr.mxu0 0.0
    %1443 = vmatpush1.msra.mxu0 %v577
    %1444 = vmatprep.subr.mxu0 0.0
    %1445 = vmatpush1.msra.mxu0 %v578
    %1446 = vmatprep.subr.mxu0 0.0
    %1447 = vmatpush1.msra.mxu0 %v579
    %1448 = vmatprep.subr.mxu0 0.0
    %1449 = vmatpush1.msra.mxu0 0.0
    %1450 = vmatprep.subr.mxu0 0.0
    %1451 = vmatpush1.msra.mxu0 0.0
    %1452 = vmatprep.subr.mxu0 0.0
    %1453 = vmatpush1.msra.mxu0 0.0
    %1454 = vmatprep.subr.mxu0 0.0
    %1455 = vmatpush1.msra.mxu0 0.0
    %1456 = vmatprep.subr.mxu0 0.0
    %1457 = vmatpush1.msra.mxu0 0.0
    %1458 = vmatprep.subr.mxu0 0.0
    %1459 = vmatpush1.msra.mxu0 0.0
    %1460 = vmatprep.subr.mxu0 0.0
    %1461 = vmatpush1.msra.mxu0 0.0
    %1462 = vmatprep.subr.mxu0 0.0
    %1463 = vmatpush1.msra.mxu0 0.0
    %1464 = vmatprep.subr.mxu0 0.0
    %1465 = vmatpush1.msra.mxu0 0.0
    %1466 = vmatprep.subr.mxu0 0.0
    %1467 = vmatpush1.msra.mxu0 0.0
    %1468 = vmatprep.subr.mxu0 0.0
    %1469 = vmatpush1.msra.mxu0 0.0
    %1470 = vmatprep.subr.mxu0 0.0
    %1471 = vmatpush1.msra.mxu0 0.0
    %1472 = vmatprep.subr.mxu0 0.0
    %1473 = vmatpush1.msra.mxu0 0.0
    %1474 = vmatprep.subr.mxu0 0.0
    %1475 = vmatpush1.msra.mxu0 0.0
    %1476 = vmatprep.subr.mxu0 0.0
    %1477 = vmatpush1.msra.mxu0 0.0
    %1478 = vmatprep.subr.mxu0 0.0
    %1479 = vmatpush1.msra.mxu0 0.0
    %1480 = vmatprep.subr.mxu0 0.0
    %1481 = vmatpush1.msra.mxu0 0.0
    %1482 = vmatprep.subr.mxu0 0.0
    %1483 = vmatpush1.msra.mxu0 0.0
    %1484 = vmatprep.subr.mxu0 0.0
    %1485 = vmatpush1.msra.mxu0 0.0
    %1486 = vmatprep.subr.mxu0 0.0
    %1487 = vmatpush1.msra.mxu0 0.0
    %1488 = vmatprep.subr.mxu0 0.0
    %1489 = vmatpush1.msra.mxu0 0.0
    %1490 = vmatprep.subr.mxu0 0.0
    %1491 = vmatpush1.msra.mxu0 0.0
    %1492 = vmatprep.subr.mxu0 0.0
    %1493 = vmatpush1.msra.mxu0 0.0
    %1494 = vmatprep.subr.mxu0 0.0
    %1495 = vmatpush1.msra.mxu0 0.0
    %1496 = vmatprep.mubr.f32.mxu0 0.0
    %1497 = vmatmul.mubr.f32.gmra.mrb[0].mxu0 %v1430
    %v1498 = vpop.f32.mrb[0].mxu0
    %v1499 = vadd.f32 %v580, %v1498
    %v1500 = vpop.f32.mrb[0].mxu0
    %1501 = vdwg.mxu0
    %v1502 = vxor.u32 %v1499, 2147483648
    %v1503 = vmul.f32 %v1502, 1.442695
    %v1504 = vpow.pop %v1503
    %v1505 = vadd.f32 %v1504, 1.0
    %v1506 = vrcp.pop %v1505
    %v1507 = vmul.f32 1.0, %v1506
    %v1508 = vtanh.pop %v1499
    %v1509 = vmul.f32 %v1507, %v1305
    %1511 = vrot.lane.b32.xlu0 %v1508, 32
    %v1512 = vpop.permute.xlu0 %1511
    %v1514 = vmul.f32 %v1507, %v1512
    %1516 = vrot.lane.b32.xlu0 %v1514, 32
    %v1517 = vpop.permute.xlu0 %1516
    %v1519 = vadd.f32 %v1509, %v1517
    %v1520 = vtanh.pop %v1519
    %1522 = vrot.lane.b32.xlu0 %v1520, 32
    %v1523 = vpop.permute.xlu0 %1522
    %v1525 = vmul.f32 %v1507, %v1523
    %v1527 = vrot.slane %v1418, 4
    %1528 = vrot.lane.b32.xlu0 %v1527, 64
    %v1529 = vpop.permute.xlu0 %1528
    %v1530 = vsel %vm300, %v1529, 0
    %1532 = vmatprep.subr.mxu0 0.0
    %1533 = vmatpush1.msra.mxu0 %v490
    %1534 = vmatprep.subr.mxu0 0.0
    %1535 = vmatpush1.msra.mxu0 %v491
    %1536 = vmatprep.subr.mxu0 0.0
    %1537 = vmatpush1.msra.mxu0 %v492
    %1538 = vmatprep.subr.mxu0 0.0
    %1539 = vmatpush1.msra.mxu0 %v493
    %1540 = vmatprep.subr.mxu0 0.0
    %1541 = vmatpush1.msra.mxu0 0.0
    %1542 = vmatprep.subr.mxu0 0.0
    %1543 = vmatpush1.msra.mxu0 0.0
    %1544 = vmatprep.subr.mxu0 0.0
    %1545 = vmatpush1.msra.mxu0 0.0
    %1546 = vmatprep.subr.mxu0 0.0
    %1547 = vmatpush1.msra.mxu0 0.0
    %1548 = vmatprep.subr.mxu0 0.0
    %1549 = vmatpush1.msra.mxu0 0.0
    %1550 = vmatprep.subr.mxu0 0.0
    %1551 = vmatpush1.msra.mxu0 0.0
    %1552 = vmatprep.subr.mxu0 0.0
    %1553 = vmatpush1.msra.mxu0 0.0
    %1554 = vmatprep.subr.mxu0 0.0
    %1555 = vmatpush1.msra.mxu0 0.0
    %1556 = vmatprep.subr.mxu0 0.0
    %1557 = vmatpush1.msra.mxu0 0.0
    %1558 = vmatprep.subr.mxu0 0.0
    %1559 = vmatpush1.msra.mxu0 0.0
    %1560 = vmatprep.subr.mxu0 0.0
    %1561 = vmatpush1.msra.mxu0 0.0
    %1562 = vmatprep.subr.mxu0 0.0
    %1563 = vmatpush1.msra.mxu0 0.0
    %1564 = vmatprep.subr.mxu0 0.0
    %1565 = vmatpush1.msra.mxu0 0.0
    %1566 = vmatprep.subr.mxu0 0.0
    %1567 = vmatpush1.msra.mxu0 0.0
    %1568 = vmatprep.subr.mxu0 0.0
    %1569 = vmatpush1.msra.mxu0 0.0
    %1570 = vmatprep.subr.mxu0 0.0
    %1571 = vmatpush1.msra.mxu0 0.0
    %1572 = vmatprep.subr.mxu0 0.0
    %1573 = vmatpush1.msra.mxu0 0.0
    %1574 = vmatprep.subr.mxu0 0.0
    %1575 = vmatpush1.msra.mxu0 0.0
    %1576 = vmatprep.subr.mxu0 0.0
    %1577 = vmatpush1.msra.mxu0 0.0
    %1578 = vmatprep.subr.mxu0 0.0
    %1579 = vmatpush1.msra.mxu0 0.0
    %1580 = vmatprep.subr.mxu0 0.0
    %1581 = vmatpush1.msra.mxu0 0.0
    %1582 = vmatprep.subr.mxu0 0.0
    %1583 = vmatpush1.msra.mxu0 0.0
    %1584 = vmatprep.subr.mxu0 0.0
    %1585 = vmatpush1.msra.mxu0 0.0
    %1586 = vmatprep.subr.mxu0 0.0
    %1587 = vmatpush1.msra.mxu0 0.0
    %1588 = vmatprep.subr.mxu0 0.0
    %1589 = vmatpush1.msra.mxu0 0.0
    %1590 = vmatprep.subr.mxu0 0.0
    %1591 = vmatpush1.msra.mxu0 0.0
    %1592 = vmatprep.subr.mxu0 0.0
    %1593 = vmatpush1.msra.mxu0 0.0
    %1594 = vmatprep.subr.mxu0 0.0
    %1595 = vmatpush1.msra.mxu0 0.0
    %1596 = vmatprep.mubr.f32.mxu0 0.0
    %1597 = vmatmul.mubr.f32.gmra.mrb[0].mxu0 %v1530
    %v1598 = vpop.f32.mrb[0].mxu0
    %v1599 = vadd.f32 0.0, %v1598
    %v1600 = vpop.f32.mrb[0].mxu0
    %1601 = vdwg.mxu0
    %v1603 = vrot.slane %v1599, 3
    %v1605 = vadd.f32 %v569, %v1603
    %v1606 = vxor.u32 %v1605, 2147483648
    %v1607 = vmul.f32 %v1606, 1.442695
    %v1608 = vpow.pop %v1607
    %v1609 = vadd.f32 %v1608, 1.0
    %v1610 = vrcp.pop %v1609
    %v1611 = vmul.f32 1.0, %v1610
    %v1612 = vtanh.pop %v1605
    %v1614 = vrot.slane %v1412, 7
    %v1616 = vmul.f32 %v1611, %v1614
    %1618 = vrot.lane.b32.xlu0 %v1612, 32
    %v1619 = vpop.permute.xlu0 %1618
    %v1621 = vmul.f32 %v1611, %v1619
    %1623 = vrot.lane.b32.xlu0 %v1621, 32
    %v1624 = vpop.permute.xlu0 %1623
    %v1626 = vadd.f32 %v1616, %v1624
    %v1627 = vtanh.pop %v1626
    %1629 = vrot.lane.b32.xlu0 %v1627, 32
    %v1630 = vpop.permute.xlu0 %1629
    %v1632 = vmul.f32 %v1611, %v1630
    %1633 = vrot.lane.b32.xlu0 %v1418, 64
    %v1634 = vpop.permute.xlu0 %1633
    %v1637 = vrot.slane %v1525, 4
    %1638 = vrot.lane.b32.xlu0 %v1637, 96
    %v1639 = vpop.permute.xlu0 %1638
    %v1641 = vsel %vm300, %v1634, %v1639
    %v1643 = vrot.slane %v1641, 4
    %v1644 = vsel %vm55, %v1643, 0
    %1646 = vmatprep.subr.mxu0 0.0
    %1647 = vmatpush1.msra.mxu0 %v572
    %1648 = vmatprep.subr.mxu0 0.0
    %1649 = vmatpush1.msra.mxu0 %v573
    %1650 = vmatprep.subr.mxu0 0.0
    %1651 = vmatpush1.msra.mxu0 %v574
    %1652 = vmatprep.subr.mxu0 0.0
    %1653 = vmatpush1.msra.mxu0 %v575
    %1654 = vmatprep.subr.mxu0 0.0
    %1655 = vmatpush1.msra.mxu0 %v576
    %1656 = vmatprep.subr.mxu0 0.0
    %1657 = vmatpush1.msra.mxu0 %v577
    %1658 = vmatprep.subr.mxu0 0.0
    %1659 = vmatpush1.msra.mxu0 %v578
    %1660 = vmatprep.subr.mxu0 0.0
    %1661 = vmatpush1.msra.mxu0 %v579
    %1662 = vmatprep.subr.mxu0 0.0
    %1663 = vmatpush1.msra.mxu0 0.0
    %1664 = vmatprep.subr.mxu0 0.0
    %1665 = vmatpush1.msra.mxu0 0.0
    %1666 = vmatprep.subr.mxu0 0.0
    %1667 = vmatpush1.msra.mxu0 0.0
    %1668 = vmatprep.subr.mxu0 0.0
    %1669 = vmatpush1.msra.mxu0 0.0
    %1670 = vmatprep.subr.mxu0 0.0
    %1671 = vmatpush1.msra.mxu0 0.0
    %1672 = vmatprep.subr.mxu0 0.0
    %1673 = vmatpush1.msra.mxu0 0.0
    %1674 = vmatprep.subr.mxu0 0.0
    %1675 = vmatpush1.msra.mxu0 0.0
    %1676 = vmatprep.subr.mxu0 0.0
    %1677 = vmatpush1.msra.mxu0 0.0
    %1678 = vmatprep.subr.mxu0 0.0
    %1679 = vmatpush1.msra.mxu0 0.0
    %1680 = vmatprep.subr.mxu0 0.0
    %1681 = vmatpush1.msra.mxu0 0.0
    %1682 = vmatprep.subr.mxu0 0.0
    %1683 = vmatpush1.msra.mxu0 0.0
    %1684 = vmatprep.subr.mxu0 0.0
    %1685 = vmatpush1.msra.mxu0 0.0
    %1686 = vmatprep.subr.mxu0 0.0
    %1687 = vmatpush1.msra.mxu0 0.0
    %1688 = vmatprep.subr.mxu0 0.0
    %1689 = vmatpush1.msra.mxu0 0.0
    %1690 = vmatprep.subr.mxu0 0.0
    %1691 = vmatpush1.msra.mxu0 0.0
    %1692 = vmatprep.subr.mxu0 0.0
    %1693 = vmatpush1.msra.mxu0 0.0
    %1694 = vmatprep.subr.mxu0 0.0
    %1695 = vmatpush1.msra.mxu0 0.0
    %1696 = vmatprep.subr.mxu0 0.0
    %1697 = vmatpush1.msra.mxu0 0.0
    %1698 = vmatprep.subr.mxu0 0.0
    %1699 = vmatpush1.msra.mxu0 0.0
    %1700 = vmatprep.subr.mxu0 0.0
    %1701 = vmatpush1.msra.mxu0 0.0
    %1702 = vmatprep.subr.mxu0 0.0
    %1703 = vmatpush1.msra.mxu0 0.0
    %1704 = vmatprep.subr.mxu0 0.0
    %1705 = vmatpush1.msra.mxu0 0.0
    %1706 = vmatprep.subr.mxu0 0.0
    %1707 = vmatpush1.msra.mxu0 0.0
    %1708 = vmatprep.subr.mxu0 0.0
    %1709 = vmatpush1.msra.mxu0 0.0
    %1710 = vmatprep.mubr.f32.mxu0 0.0
    %1711 = vmatmul.mubr.f32.gmra.mrb[0].mxu0 %v1644
    %v1712 = vpop.f32.mrb[0].mxu0
    %v1713 = vadd.f32 %v580, %v1712
    %v1714 = vpop.f32.mrb[0].mxu0
    %1715 = vdwg.mxu0
    %v1716 = vxor.u32 %v1713, 2147483648
    %v1717 = vmul.f32 %v1716, 1.442695
    %v1718 = vpow.pop %v1717
    %v1719 = vadd.f32 %v1718, 1.0
    %v1720 = vrcp.pop %v1719
    %v1721 = vmul.f32 1.0, %v1720
    %v1722 = vtanh.pop %v1713
    %v1723 = vmul.f32 %v1721, %v1519
    %1725 = vrot.lane.b32.xlu0 %v1722, 32
    %v1726 = vpop.permute.xlu0 %1725
    %v1728 = vmul.f32 %v1721, %v1726
    %1730 = vrot.lane.b32.xlu0 %v1728, 32
    %v1731 = vpop.permute.xlu0 %1730
    %v1733 = vadd.f32 %v1723, %v1731
    %v1734 = vtanh.pop %v1733
    %1736 = vrot.lane.b32.xlu0 %v1734, 32
    %v1737 = vpop.permute.xlu0 %1736
    %v1739 = vmul.f32 %v1721, %v1737
    %v1741 = vrot.slane %v1632, 5
    %1742 = vrot.lane.b32.xlu0 %v1741, 64
    %v1743 = vpop.permute.xlu0 %1742
    %v1744 = vsel %vm300, %v1743, 0
    %1746 = vmatprep.subr.mxu0 0.0
    %1747 = vmatpush1.msra.mxu0 %v490
    %1748 = vmatprep.subr.mxu0 0.0
    %1749 = vmatpush1.msra.mxu0 %v491
    %1750 = vmatprep.subr.mxu0 0.0
    %1751 = vmatpush1.msra.mxu0 %v492
    %1752 = vmatprep.subr.mxu0 0.0
    %1753 = vmatpush1.msra.mxu0 %v493
    %1754 = vmatprep.subr.mxu0 0.0
    %1755 = vmatpush1.msra.mxu0 0.0
    %1756 = vmatprep.subr.mxu0 0.0
    %1757 = vmatpush1.msra.mxu0 0.0
    %1758 = vmatprep.subr.mxu0 0.0
    %1759 = vmatpush1.msra.mxu0 0.0
    %1760 = vmatprep.subr.mxu0 0.0
    %1761 = vmatpush1.msra.mxu0 0.0
    %1762 = vmatprep.subr.mxu0 0.0
    %1763 = vmatpush1.msra.mxu0 0.0
    %1764 = vmatprep.subr.mxu0 0.0
    %1765 = vmatpush1.msra.mxu0 0.0
    %1766 = vmatprep.subr.mxu0 0.0
    %1767 = vmatpush1.msra.mxu0 0.0
    %1768 = vmatprep.subr.mxu0 0.0
    %1769 = vmatpush1.msra.mxu0 0.0
    %1770 = vmatprep.subr.mxu0 0.0
    %1771 = vmatpush1.msra.mxu0 0.0
    %1772 = vmatprep.subr.mxu0 0.0
    %1773 = vmatpush1.msra.mxu0 0.0
    %1774 = vmatprep.subr.mxu0 0.0
    %1775 = vmatpush1.msra.mxu0 0.0
    %1776 = vmatprep.subr.mxu0 0.0
    %1777 = vmatpush1.msra.mxu0 0.0
    %1778 = vmatprep.subr.mxu0 0.0
    %1779 = vmatpush1.msra.mxu0 0.0
    %1780 = vmatprep.subr.mxu0 0.0
    %1781 = vmatpush1.msra.mxu0 0.0
    %1782 = vmatprep.subr.mxu0 0.0
    %1783 = vmatpush1.msra.mxu0 0.0
    %1784 = vmatprep.subr.mxu0 0.0
    %1785 = vmatpush1.msra.mxu0 0.0
    %1786 = vmatprep.subr.mxu0 0.0
    %1787 = vmatpush1.msra.mxu0 0.0
    %1788 = vmatprep.subr.mxu0 0.0
    %1789 = vmatpush1.msra.mxu0 0.0
    %1790 = vmatprep.subr.mxu0 0.0
    %1791 = vmatpush1.msra.mxu0 0.0
    %1792 = vmatprep.subr.mxu0 0.0
    %1793 = vmatpush1.msra.mxu0 0.0
    %1794 = vmatprep.subr.mxu0 0.0
    %1795 = vmatpush1.msra.mxu0 0.0
    %1796 = vmatprep.subr.mxu0 0.0
    %1797 = vmatpush1.msra.mxu0 0.0
    %1798 = vmatprep.subr.mxu0 0.0
    %1799 = vmatpush1.msra.mxu0 0.0
    %1800 = vmatprep.subr.mxu0 0.0
    %1801 = vmatpush1.msra.mxu0 0.0
    %1802 = vmatprep.subr.mxu0 0.0
    %1803 = vmatpush1.msra.mxu0 0.0
    %1804 = vmatprep.subr.mxu0 0.0
    %1805 = vmatpush1.msra.mxu0 0.0
    %1806 = vmatprep.subr.mxu0 0.0
    %1807 = vmatpush1.msra.mxu0 0.0
    %1808 = vmatprep.subr.mxu0 0.0
    %1809 = vmatpush1.msra.mxu0 0.0
    %1810 = vmatprep.mubr.f32.mxu0 0.0
    %1811 = vmatmul.mubr.f32.gmra.mrb[0].mxu0 %v1744
    %v1812 = vpop.f32.mrb[0].mxu0
    %v1813 = vadd.f32 0.0, %v1812
    %v1814 = vpop.f32.mrb[0].mxu0
    %1815 = vdwg.mxu0
    %v1817 = vrot.slane %v1813, 2
    %v1819 = vadd.f32 %v569, %v1817
    %v1820 = vxor.u32 %v1819, 2147483648
    %v1821 = vmul.f32 %v1820, 1.442695
    %v1822 = vpow.pop %v1821
    %v1823 = vadd.f32 %v1822, 1.0
    %v1824 = vrcp.pop %v1823
    %v1825 = vmul.f32 1.0, %v1824
    %v1826 = vtanh.pop %v1819
    %v1828 = vrot.slane %v1626, 7
    %v1830 = vmul.f32 %v1825, %v1828
    %1832 = vrot.lane.b32.xlu0 %v1826, 32
    %v1833 = vpop.permute.xlu0 %1832
    %v1835 = vmul.f32 %v1825, %v1833
    %1837 = vrot.lane.b32.xlu0 %v1835, 32
    %v1838 = vpop.permute.xlu0 %1837
    %v1840 = vadd.f32 %v1830, %v1838
    %v1841 = vtanh.pop %v1840
    %1843 = vrot.lane.b32.xlu0 %v1841, 32
    %v1844 = vpop.permute.xlu0 %1843
    %v1846 = vmul.f32 %v1825, %v1844
    %1847 = vrot.lane.b32.xlu0 %v1632, 64
    %v1848 = vpop.permute.xlu0 %1847
    %v1851 = vrot.slane %v1739, 3
    %1852 = vrot.lane.b32.xlu0 %v1851, 96
    %v1853 = vpop.permute.xlu0 %1852
    %v1855 = vsel %vm300, %v1848, %v1853
    %v1857 = vrot.slane %v1855, 5
    %v1858 = vsel %vm55, %v1857, 0
    %1860 = vmatprep.subr.mxu0 0.0
    %1861 = vmatpush1.msra.mxu0 %v572
    %1862 = vmatprep.subr.mxu0 0.0
    %1863 = vmatpush1.msra.mxu0 %v573
    %1864 = vmatprep.subr.mxu0 0.0
    %1865 = vmatpush1.msra.mxu0 %v574
    %1866 = vmatprep.subr.mxu0 0.0
    %1867 = vmatpush1.msra.mxu0 %v575
    %1868 = vmatprep.subr.mxu0 0.0
    %1869 = vmatpush1.msra.mxu0 %v576
    %1870 = vmatprep.subr.mxu0 0.0
    %1871 = vmatpush1.msra.mxu0 %v577
    %1872 = vmatprep.subr.mxu0 0.0
    %1873 = vmatpush1.msra.mxu0 %v578
    %1874 = vmatprep.subr.mxu0 0.0
    %1875 = vmatpush1.msra.mxu0 %v579
    %1876 = vmatprep.subr.mxu0 0.0
    %1877 = vmatpush1.msra.mxu0 0.0
    %1878 = vmatprep.subr.mxu0 0.0
    %1879 = vmatpush1.msra.mxu0 0.0
    %1880 = vmatprep.subr.mxu0 0.0
    %1881 = vmatpush1.msra.mxu0 0.0
    %1882 = vmatprep.subr.mxu0 0.0
    %1883 = vmatpush1.msra.mxu0 0.0
    %1884 = vmatprep.subr.mxu0 0.0
    %1885 = vmatpush1.msra.mxu0 0.0
    %1886 = vmatprep.subr.mxu0 0.0
    %1887 = vmatpush1.msra.mxu0 0.0
    %1888 = vmatprep.subr.mxu0 0.0
    %1889 = vmatpush1.msra.mxu0 0.0
    %1890 = vmatprep.subr.mxu0 0.0
    %1891 = vmatpush1.msra.mxu0 0.0
    %1892 = vmatprep.subr.mxu0 0.0
    %1893 = vmatpush1.msra.mxu0 0.0
    %1894 = vmatprep.subr.mxu0 0.0
    %1895 = vmatpush1.msra.mxu0 0.0
    %1896 = vmatprep.subr.mxu0 0.0
    %1897 = vmatpush1.msra.mxu0 0.0
    %1898 = vmatprep.subr.mxu0 0.0
    %1899 = vmatpush1.msra.mxu0 0.0
    %1900 = vmatprep.subr.mxu0 0.0
    %1901 = vmatpush1.msra.mxu0 0.0
    %1902 = vmatprep.subr.mxu0 0.0
    %1903 = vmatpush1.msra.mxu0 0.0
    %1904 = vmatprep.subr.mxu0 0.0
    %1905 = vmatpush1.msra.mxu0 0.0
    %1906 = vmatprep.subr.mxu0 0.0
    %1907 = vmatpush1.msra.mxu0 0.0
    %1908 = vmatprep.subr.mxu0 0.0
    %1909 = vmatpush1.msra.mxu0 0.0
    %1910 = vmatprep.subr.mxu0 0.0
    %1911 = vmatpush1.msra.mxu0 0.0
    %1912 = vmatprep.subr.mxu0 0.0
    %1913 = vmatpush1.msra.mxu0 0.0
    %1914 = vmatprep.subr.mxu0 0.0
    %1915 = vmatpush1.msra.mxu0 0.0
    %1916 = vmatprep.subr.mxu0 0.0
    %1917 = vmatpush1.msra.mxu0 0.0
    %1918 = vmatprep.subr.mxu0 0.0
    %1919 = vmatpush1.msra.mxu0 0.0
    %1920 = vmatprep.subr.mxu0 0.0
    %1921 = vmatpush1.msra.mxu0 0.0
    %1922 = vmatprep.subr.mxu0 0.0
    %1923 = vmatpush1.msra.mxu0 0.0
    %1924 = vmatprep.mubr.f32.mxu0 0.0
    %1925 = vmatmul.mubr.f32.gmra.mrb[0].mxu0 %v1858
    %v1926 = vpop.f32.mrb[0].mxu0
    %v1927 = vadd.f32 %v580, %v1926
    %v1928 = vpop.f32.mrb[0].mxu0
    %1929 = vdwg.mxu0
    %v1930 = vxor.u32 %v1927, 2147483648
    %v1931 = vmul.f32 %v1930, 1.442695
    %v1932 = vpow.pop %v1931
    %v1933 = vadd.f32 %v1932, 1.0
    %v1934 = vrcp.pop %v1933
    %v1935 = vmul.f32 1.0, %v1934
    %v1936 = vtanh.pop %v1927
    %v1937 = vmul.f32 %v1935, %v1733
    %1939 = vrot.lane.b32.xlu0 %v1936, 32
    %v1940 = vpop.permute.xlu0 %1939
    %v1942 = vmul.f32 %v1935, %v1940
    %1944 = vrot.lane.b32.xlu0 %v1942, 32
    %v1945 = vpop.permute.xlu0 %1944
    %v1947 = vadd.f32 %v1937, %v1945
    %v1948 = vtanh.pop %v1947
    %1950 = vrot.lane.b32.xlu0 %v1948, 32
    %v1951 = vpop.permute.xlu0 %1950
    %v1953 = vmul.f32 %v1935, %v1951
    %v1955 = vrot.slane %v1846, 6
    %1956 = vrot.lane.b32.xlu0 %v1955, 64
    %v1957 = vpop.permute.xlu0 %1956
    %v1958 = vsel %vm300, %v1957, 0
    %1960 = vmatprep.subr.mxu0 0.0
    %1961 = vmatpush1.msra.mxu0 %v490
    %1962 = vmatprep.subr.mxu0 0.0
    %1963 = vmatpush1.msra.mxu0 %v491
    %1964 = vmatprep.subr.mxu0 0.0
    %1965 = vmatpush1.msra.mxu0 %v492
    %1966 = vmatprep.subr.mxu0 0.0
    %1967 = vmatpush1.msra.mxu0 %v493
    %1968 = vmatprep.subr.mxu0 0.0
    %1969 = vmatpush1.msra.mxu0 0.0
    %1970 = vmatprep.subr.mxu0 0.0
    %1971 = vmatpush1.msra.mxu0 0.0
    %1972 = vmatprep.subr.mxu0 0.0
    %1973 = vmatpush1.msra.mxu0 0.0
    %1974 = vmatprep.subr.mxu0 0.0
    %1975 = vmatpush1.msra.mxu0 0.0
    %1976 = vmatprep.subr.mxu0 0.0
    %1977 = vmatpush1.msra.mxu0 0.0
    %1978 = vmatprep.subr.mxu0 0.0
    %1979 = vmatpush1.msra.mxu0 0.0
    %1980 = vmatprep.subr.mxu0 0.0
    %1981 = vmatpush1.msra.mxu0 0.0
    %1982 = vmatprep.subr.mxu0 0.0
    %1983 = vmatpush1.msra.mxu0 0.0
    %1984 = vmatprep.subr.mxu0 0.0
    %1985 = vmatpush1.msra.mxu0 0.0
    %1986 = vmatprep.subr.mxu0 0.0
    %1987 = vmatpush1.msra.mxu0 0.0
    %1988 = vmatprep.subr.mxu0 0.0
    %1989 = vmatpush1.msra.mxu0 0.0
    %1990 = vmatprep.subr.mxu0 0.0
    %1991 = vmatpush1.msra.mxu0 0.0
    %1992 = vmatprep.subr.mxu0 0.0
    %1993 = vmatpush1.msra.mxu0 0.0
    %1994 = vmatprep.subr.mxu0 0.0
    %1995 = vmatpush1.msra.mxu0 0.0
    %1996 = vmatprep.subr.mxu0 0.0
    %1997 = vmatpush1.msra.mxu0 0.0
    %1998 = vmatprep.subr.mxu0 0.0
    %1999 = vmatpush1.msra.mxu0 0.0
    %2000 = vmatprep.subr.mxu0 0.0
    %2001 = vmatpush1.msra.mxu0 0.0
    %2002 = vmatprep.subr.mxu0 0.0
    %2003 = vmatpush1.msra.mxu0 0.0
    %2004 = vmatprep.subr.mxu0 0.0
    %2005 = vmatpush1.msra.mxu0 0.0
    %2006 = vmatprep.subr.mxu0 0.0
    %2007 = vmatpush1.msra.mxu0 0.0
    %2008 = vmatprep.subr.mxu0 0.0
    %2009 = vmatpush1.msra.mxu0 0.0
    %2010 = vmatprep.subr.mxu0 0.0
    %2011 = vmatpush1.msra.mxu0 0.0
    %2012 = vmatprep.subr.mxu0 0.0
    %2013 = vmatpush1.msra.mxu0 0.0
    %2014 = vmatprep.subr.mxu0 0.0
    %2015 = vmatpush1.msra.mxu0 0.0
    %2016 = vmatprep.subr.mxu0 0.0
    %2017 = vmatpush1.msra.mxu0 0.0
    %2018 = vmatprep.subr.mxu0 0.0
    %2019 = vmatpush1.msra.mxu0 0.0
    %2020 = vmatprep.subr.mxu0 0.0
    %2021 = vmatpush1.msra.mxu0 0.0
    %2022 = vmatprep.subr.mxu0 0.0
    %2023 = vmatpush1.msra.mxu0 0.0
    %2024 = vmatprep.mubr.f32.mxu0 0.0
    %2025 = vmatmul.mubr.f32.gmra.mrb[0].mxu0 %v1958
    %v2026 = vpop.f32.mrb[0].mxu0
    %v2027 = vadd.f32 0.0, %v2026
    %v2028 = vpop.f32.mrb[0].mxu0
    %2029 = vdwg.mxu0
    %v2031 = vrot.slane %v2027, 1
    %v2033 = vadd.f32 %v569, %v2031
    %v2034 = vxor.u32 %v2033, 2147483648
    %v2035 = vmul.f32 %v2034, 1.442695
    %v2036 = vpow.pop %v2035
    %v2037 = vadd.f32 %v2036, 1.0
    %v2038 = vrcp.pop %v2037
    %v2039 = vmul.f32 1.0, %v2038
    %v2040 = vtanh.pop %v2033
    %v2042 = vrot.slane %v1840, 7
    %v2044 = vmul.f32 %v2039, %v2042
    %2046 = vrot.lane.b32.xlu0 %v2040, 32
    %v2047 = vpop.permute.xlu0 %2046
    %v2049 = vmul.f32 %v2039, %v2047
    %2051 = vrot.lane.b32.xlu0 %v2049, 32
    %v2052 = vpop.permute.xlu0 %2051
    %v2054 = vadd.f32 %v2044, %v2052
    %v2055 = vtanh.pop %v2054
    %2057 = vrot.lane.b32.xlu0 %v2055, 32
    %v2058 = vpop.permute.xlu0 %2057
    %v2060 = vmul.f32 %v2039, %v2058
    %2061 = vrot.lane.b32.xlu0 %v1846, 64
    %v2062 = vpop.permute.xlu0 %2061
    %v2065 = vrot.slane %v1953, 2
    %2066 = vrot.lane.b32.xlu0 %v2065, 96
    %v2067 = vpop.permute.xlu0 %2066
    %v2069 = vsel %vm300, %v2062, %v2067
    %v2071 = vrot.slane %v2069, 6
    %v2072 = vsel %vm55, %v2071, 0
    %2074 = vmatprep.subr.mxu0 0.0
    %2075 = vmatpush1.msra.mxu0 %v572
    %2076 = vmatprep.subr.mxu0 0.0
    %2077 = vmatpush1.msra.mxu0 %v573
    %2078 = vmatprep.subr.mxu0 0.0
    %2079 = vmatpush1.msra.mxu0 %v574
    %2080 = vmatprep.subr.mxu0 0.0
    %2081 = vmatpush1.msra.mxu0 %v575
    %2082 = vmatprep.subr.mxu0 0.0
    %2083 = vmatpush1.msra.mxu0 %v576
    %2084 = vmatprep.subr.mxu0 0.0
    %2085 = vmatpush1.msra.mxu0 %v577
    %2086 = vmatprep.subr.mxu0 0.0
    %2087 = vmatpush1.msra.mxu0 %v578
    %2088 = vmatprep.subr.mxu0 0.0
    %2089 = vmatpush1.msra.mxu0 %v579
    %2090 = vmatprep.subr.mxu0 0.0
    %2091 = vmatpush1.msra.mxu0 0.0
    %2092 = vmatprep.subr.mxu0 0.0
    %2093 = vmatpush1.msra.mxu0 0.0
    %2094 = vmatprep.subr.mxu0 0.0
    %2095 = vmatpush1.msra.mxu0 0.0
    %2096 = vmatprep.subr.mxu0 0.0
    %2097 = vmatpush1.msra.mxu0 0.0
    %2098 = vmatprep.subr.mxu0 0.0
    %2099 = vmatpush1.msra.mxu0 0.0
    %2100 = vmatprep.subr.mxu0 0.0
    %2101 = vmatpush1.msra.mxu0 0.0
    %2102 = vmatprep.subr.mxu0 0.0
    %2103 = vmatpush1.msra.mxu0 0.0
    %2104 = vmatprep.subr.mxu0 0.0
    %2105 = vmatpush1.msra.mxu0 0.0
    %2106 = vmatprep.subr.mxu0 0.0
    %2107 = vmatpush1.msra.mxu0 0.0
    %2108 = vmatprep.subr.mxu0 0.0
    %2109 = vmatpush1.msra.mxu0 0.0
    %2110 = vmatprep.subr.mxu0 0.0
    %2111 = vmatpush1.msra.mxu0 0.0
    %2112 = vmatprep.subr.mxu0 0.0
    %2113 = vmatpush1.msra.mxu0 0.0
    %2114 = vmatprep.subr.mxu0 0.0
    %2115 = vmatpush1.msra.mxu0 0.0
    %2116 = vmatprep.subr.mxu0 0.0
    %2117 = vmatpush1.msra.mxu0 0.0
    %2118 = vmatprep.subr.mxu0 0.0
    %2119 = vmatpush1.msra.mxu0 0.0
    %2120 = vmatprep.subr.mxu0 0.0
    %2121 = vmatpush1.msra.mxu0 0.0
    %2122 = vmatprep.subr.mxu0 0.0
    %2123 = vmatpush1.msra.mxu0 0.0
    %2124 = vmatprep.subr.mxu0 0.0
    %2125 = vmatpush1.msra.mxu0 0.0
    %2126 = vmatprep.subr.mxu0 0.0
    %2127 = vmatpush1.msra.mxu0 0.0
    %2128 = vmatprep.subr.mxu0 0.0
    %2129 = vmatpush1.msra.mxu0 0.0
    %2130 = vmatprep.subr.mxu0 0.0
    %2131 = vmatpush1.msra.mxu0 0.0
    %2132 = vmatprep.subr.mxu0 0.0
    %2133 = vmatpush1.msra.mxu0 0.0
    %2134 = vmatprep.subr.mxu0 0.0
    %2135 = vmatpush1.msra.mxu0 0.0
    %2136 = vmatprep.subr.mxu0 0.0
    %2137 = vmatpush1.msra.mxu0 0.0
    %2138 = vmatprep.mubr.f32.mxu0 0.0
    %2139 = vmatmul.mubr.f32.gmra.mrb[0].mxu0 %v2072
    %v2140 = vpop.f32.mrb[0].mxu0
    %v2141 = vadd.f32 %v580, %v2140
    %v2142 = vpop.f32.mrb[0].mxu0
    %2143 = vdwg.mxu0
    %v2144 = vxor.u32 %v2141, 2147483648
    %v2145 = vmul.f32 %v2144, 1.442695
    %v2146 = vpow.pop %v2145
    %v2147 = vadd.f32 %v2146, 1.0
    %v2148 = vrcp.pop %v2147
    %v2149 = vmul.f32 1.0, %v2148
    %v2150 = vtanh.pop %v2141
    %v2151 = vmul.f32 %v2149, %v1947
    %2153 = vrot.lane.b32.xlu0 %v2150, 32
    %v2154 = vpop.permute.xlu0 %2153
    %v2156 = vmul.f32 %v2149, %v2154
    %2158 = vrot.lane.b32.xlu0 %v2156, 32
    %v2159 = vpop.permute.xlu0 %2158
    %v2161 = vadd.f32 %v2151, %v2159
    %v2162 = vtanh.pop %v2161
    %2164 = vrot.lane.b32.xlu0 %v2162, 32
    %v2165 = vpop.permute.xlu0 %2164
    %v2167 = vmul.f32 %v2149, %v2165
    %2169 = vrot.lane.b32.xlu0 %v2060, 64
    %v2170 = vpop.permute.xlu0 %2169
    %v2173 = vrot.slane %v2167, 1
    %2174 = vrot.lane.b32.xlu0 %v2173, 96
    %v2175 = vpop.permute.xlu0 %2174
    %v2177 = vsel %vm300, %v2170, %v2175
    %v2179 = vrot.slane %v2177, 7
    %v2180 = vsel %vm55, %v2179, 0
    %2182 = vmatprep.subr.mxu0 0.0
    %2183 = vmatpush1.msra.mxu0 %v572
    %2184 = vmatprep.subr.mxu0 0.0
    %2185 = vmatpush1.msra.mxu0 %v573
    %2186 = vmatprep.subr.mxu0 0.0
    %2187 = vmatpush1.msra.mxu0 %v574
    %2188 = vmatprep.subr.mxu0 0.0
    %2189 = vmatpush1.msra.mxu0 %v575
    %2190 = vmatprep.subr.mxu0 0.0
    %2191 = vmatpush1.msra.mxu0 %v576
    %2192 = vmatprep.subr.mxu0 0.0
    %2193 = vmatpush1.msra.mxu0 %v577
    %2194 = vmatprep.subr.mxu0 0.0
    %2195 = vmatpush1.msra.mxu0 %v578
    %2196 = vmatprep.subr.mxu0 0.0
    %2197 = vmatpush1.msra.mxu0 %v579
    %2198 = vmatprep.subr.mxu0 0.0
    %2199 = vmatpush1.msra.mxu0 0.0
    %2200 = vmatprep.subr.mxu0 0.0
    %2201 = vmatpush1.msra.mxu0 0.0
    %2202 = vmatprep.subr.mxu0 0.0
    %2203 = vmatpush1.msra.mxu0 0.0
    %2204 = vmatprep.subr.mxu0 0.0
    %2205 = vmatpush1.msra.mxu0 0.0
    %2206 = vmatprep.subr.mxu0 0.0
    %2207 = vmatpush1.msra.mxu0 0.0
    %2208 = vmatprep.subr.mxu0 0.0
    %2209 = vmatpush1.msra.mxu0 0.0
    %2210 = vmatprep.subr.mxu0 0.0
    %2211 = vmatpush1.msra.mxu0 0.0
    %2212 = vmatprep.subr.mxu0 0.0
    %2213 = vmatpush1.msra.mxu0 0.0
    %2214 = vmatprep.subr.mxu0 0.0
    %2215 = vmatpush1.msra.mxu0 0.0
    %2216 = vmatprep.subr.mxu0 0.0
    %2217 = vmatpush1.msra.mxu0 0.0
    %2218 = vmatprep.subr.mxu0 0.0
    %2219 = vmatpush1.msra.mxu0 0.0
    %2220 = vmatprep.subr.mxu0 0.0
    %2221 = vmatpush1.msra.mxu0 0.0
    %2222 = vmatprep.subr.mxu0 0.0
    %2223 = vmatpush1.msra.mxu0 0.0
    %2224 = vmatprep.subr.mxu0 0.0
    %2225 = vmatpush1.msra.mxu0 0.0
    %2226 = vmatprep.subr.mxu0 0.0
    %2227 = vmatpush1.msra.mxu0 0.0
    %2228 = vmatprep.subr.mxu0 0.0
    %2229 = vmatpush1.msra.mxu0 0.0
    %2230 = vmatprep.subr.mxu0 0.0
    %2231 = vmatpush1.msra.mxu0 0.0
    %2232 = vmatprep.subr.mxu0 0.0
    %2233 = vmatpush1.msra.mxu0 0.0
    %2234 = vmatprep.subr.mxu0 0.0
    %2235 = vmatpush1.msra.mxu0 0.0
    %2236 = vmatprep.subr.mxu0 0.0
    %2237 = vmatpush1.msra.mxu0 0.0
    %2238 = vmatprep.subr.mxu0 0.0
    %2239 = vmatpush1.msra.mxu0 0.0
    %2240 = vmatprep.subr.mxu0 0.0
    %2241 = vmatpush1.msra.mxu0 0.0
    %2242 = vmatprep.subr.mxu0 0.0
    %2243 = vmatpush1.msra.mxu0 0.0
    %2244 = vmatprep.subr.mxu0 0.0
    %2245 = vmatpush1.msra.mxu0 0.0
    %2246 = vmatprep.mubr.f32.mxu0 0.0
    %2247 = vmatmul.mubr.f32.gmra.mrb[0].mxu0 %v2180
    %v2248 = vpop.f32.mrb[0].mxu0
    %v2249 = vadd.f32 %v580, %v2248
    %v2250 = vpop.f32.mrb[0].mxu0
    %2251 = vdwg.mxu0
    %v2252 = vxor.u32 %v2249, 2147483648
    %v2253 = vmul.f32 %v2252, 1.442695
    %v2254 = vpow.pop %v2253
    %v2255 = vadd.f32 %v2254, 1.0
    %v2256 = vrcp.pop %v2255
    %v2257 = vmul.f32 1.0, %v2256
    %v2258 = vtanh.pop %v2249
    %v2259 = vmul.f32 %v2257, %v2161
    %2261 = vrot.lane.b32.xlu0 %v2258, 32
    %v2262 = vpop.permute.xlu0 %2261
    %v2264 = vmul.f32 %v2257, %v2262
    %2266 = vrot.lane.b32.xlu0 %v2264, 32
    %v2267 = vpop.permute.xlu0 %2266
    %v2269 = vadd.f32 %v2259, %v2267
    %v2270 = vtanh.pop %v2269
    %2272 = vrot.lane.b32.xlu0 %v2270, 32
    %v2273 = vpop.permute.xlu0 %2272
    %v2275 = vmul.f32 %v2257, %v2273
    %v2276 = vld [vmem:[#allocation2 + $0x100] sm:$0xff]
    %v2277 = vld [vmem:[#allocation2 + $0x108] sm:$0xff]
    %v2278 = vld [vmem:[#allocation2 + $0x110] sm:$0xff]
    %v2279 = vld [vmem:[#allocation2 + $0x118] sm:$0xff]
    %v2280 = vld [vmem:[%s2 + $0x5] sm:$0x1]
    %2282 = vrot.lane.b32.xlu0 %v2275, 64
    %v2283 = vpop.permute.xlu0 %2282
    %v2284 = vsel %vm300, %v2283, 0
    %2286 = vmatprep.subr.mxu0 0.0
    %2287 = vmatpush1.msra.mxu0 %v2276
    %2288 = vmatprep.subr.mxu0 0.0
    %2289 = vmatpush1.msra.mxu0 %v2277
    %2290 = vmatprep.subr.mxu0 0.0
    %2291 = vmatpush1.msra.mxu0 %v2278
    %2292 = vmatprep.subr.mxu0 0.0
    %2293 = vmatpush1.msra.mxu0 %v2279
    %2294 = vmatprep.subr.mxu0 0.0
    %2295 = vmatpush1.msra.mxu0 0.0
    %2296 = vmatprep.subr.mxu0 0.0
    %2297 = vmatpush1.msra.mxu0 0.0
    %2298 = vmatprep.subr.mxu0 0.0
    %2299 = vmatpush1.msra.mxu0 0.0
    %2300 = vmatprep.subr.mxu0 0.0
    %2301 = vmatpush1.msra.mxu0 0.0
    %2302 = vmatprep.subr.mxu0 0.0
    %2303 = vmatpush1.msra.mxu0 0.0
    %2304 = vmatprep.subr.mxu0 0.0
    %2305 = vmatpush1.msra.mxu0 0.0
    %2306 = vmatprep.subr.mxu0 0.0
    %2307 = vmatpush1.msra.mxu0 0.0
    %2308 = vmatprep.subr.mxu0 0.0
    %2309 = vmatpush1.msra.mxu0 0.0
    %2310 = vmatprep.subr.mxu0 0.0
    %2311 = vmatpush1.msra.mxu0 0.0
    %2312 = vmatprep.subr.mxu0 0.0
    %2313 = vmatpush1.msra.mxu0 0.0
    %2314 = vmatprep.subr.mxu0 0.0
    %2315 = vmatpush1.msra.mxu0 0.0
    %2316 = vmatprep.subr.mxu0 0.0
    %2317 = vmatpush1.msra.mxu0 0.0
    %2318 = vmatprep.subr.mxu0 0.0
    %2319 = vmatpush1.msra.mxu0 0.0
    %2320 = vmatprep.subr.mxu0 0.0
    %2321 = vmatpush1.msra.mxu0 0.0
    %2322 = vmatprep.subr.mxu0 0.0
    %2323 = vmatpush1.msra.mxu0 0.0
    %2324 = vmatprep.subr.mxu0 0.0
    %2325 = vmatpush1.msra.mxu0 0.0
    %2326 = vmatprep.subr.mxu0 0.0
    %2327 = vmatpush1.msra.mxu0 0.0
    %2328 = vmatprep.subr.mxu0 0.0
    %2329 = vmatpush1.msra.mxu0 0.0
    %2330 = vmatprep.subr.mxu0 0.0
    %2331 = vmatpush1.msra.mxu0 0.0
    %2332 = vmatprep.subr.mxu0 0.0
    %2333 = vmatpush1.msra.mxu0 0.0
    %2334 = vmatprep.subr.mxu0 0.0
    %2335 = vmatpush1.msra.mxu0 0.0
    %2336 = vmatprep.subr.mxu0 0.0
    %2337 = vmatpush1.msra.mxu0 0.0
    %2338 = vmatprep.subr.mxu0 0.0
    %2339 = vmatpush1.msra.mxu0 0.0
    %2340 = vmatprep.subr.mxu0 0.0
    %2341 = vmatpush1.msra.mxu0 0.0
    %2342 = vmatprep.subr.mxu0 0.0
    %2343 = vmatpush1.msra.mxu0 0.0
    %2344 = vmatprep.subr.mxu0 0.0
    %2345 = vmatpush1.msra.mxu0 0.0
    %2346 = vmatprep.subr.mxu0 0.0
    %2347 = vmatpush1.msra.mxu0 0.0
    %2348 = vmatprep.subr.mxu0 0.0
    %2349 = vmatpush1.msra.mxu0 0.0
    %2350 = vmatprep.mubr.f32.mxu0 0.0
    %2351 = vmatmul.mubr.f32.gmra.mrb[0].mxu0 %v2284
    %v2352 = vpop.f32.mrb[0].mxu0
    %v2353 = vadd.f32 %v2280, %v2352
    %v2354 = vpop.f32.mrb[0].mxu0
    %2355 = vdwg.mxu0
    %2356 = vst [vmem:[#allocation5] sm:$0x1] %v2353
    // Predicated region
    $region18: #{tpu_custom_call.1} parent=1 // pred_check
      _
    $region19: #{tpu_custom_call.1} parent=1 // pred_check_branch
      %2358 = sbr.rel (0) target = $region21
    $region20: #{tpu_custom_call.1} parent=1 // pred_region
      %s2360 = ssub.s32 16, 16
      %2361 = vsyncadd [#allocation4], %s2360
      %s2363 = sshll.u32 [#allocation5], 4
      %s2364 = int_to_ptr.vmem [resolvable:$true] %s2363
      %2366 = dma.vmem_to_hbm [thread:$0]  %s2364, 16, %s3, [#allocation4]
    $region21: #{tpu_custom_call.1} parent=1 // pred_fallthru
      _
    // Predicated region
    $region22: #{tpu_custom_call.1} parent=1 // pred_check
      _
    $region23: #{tpu_custom_call.1} parent=1 // pred_check_branch
      %2368 = sbr.rel (0) target = $region25
    $region24: #{tpu_custom_call.1} parent=1 // pred_region
      %2369 = dma.done [#allocation4], 16
    $region25: #{tpu_custom_call.1} parent=1 // pred_fallthru
      _
    %2370 = vsyncpa [#allocation3], 1
    %2371 = vsyncpa [#allocation4], 1

</llo_original>
